<compile_context>
chip_gen: v6e
topology: v6e:2x2x1
jax: 0.10.0
libtpu: 0.0.40
codegen_flags: <defaults>
</compile_context>

<pallas_src>
import functools
import math

import jax
import jax.numpy as jnp
from jax import lax
from jax.experimental import pallas as pl
from jax.experimental.pallas import tpu as pltpu


# --------------------------- fused MHA kernel ------------------------------ #
def _mha_fused_kernel(
    xq_ref, xk_ref, xv_ref, bias_ref,
    wq_ref, bq_ref, wk_ref, bk_ref, wv_ref, bv_ref, wo_ref, bo_ref,
    o_ref, *, head, scale, compute_dtype,
):
    cd = compute_dtype

    xq = xq_ref[0].astype(cd)                      # (Sq, D)
    xk = xk_ref[0].astype(cd)                      # (Sk, D)
    xv = xv_ref[0].astype(cd)                      # (Sk, D)

    # Input projections (weights already in compute_dtype; fp32 accumulate).
    q = jnp.dot(xq, wq_ref[...], preferred_element_type=jnp.float32) + bq_ref[...]
    k = jnp.dot(xk, wk_ref[...], preferred_element_type=jnp.float32) + bk_ref[...]
    v = jnp.dot(xv, wv_ref[...], preferred_element_type=jnp.float32) + bv_ref[...]

    # Fold 1/sqrt(dk) into q: O(S*D) instead of O(S*S) scaling of scores.
    q = q * scale

    bias = bias_ref[0]                             # (1 or Sq, Sk) additive mask bias
    dk = q.shape[-1] // head

    head_outs = []
    for h in range(head):                          # static unroll over heads
        sl = slice(h * dk, (h + 1) * dk)
        qh = q[:, sl].astype(cd)                   # (Sq, dk)
        kh = k[:, sl].astype(cd)                   # (Sk, dk)
        vh = v[:, sl].astype(cd)                   # (Sk, dk)

        # scores = (q/sqrt(dk)) @ k^T + mask_bias     (contract last dims)
        scores = lax.dot_general(
            qh, kh, (((1,), (1,)), ((), ())), preferred_element_type=jnp.float32
        )
        scores = scores + bias                     # additive 0 / -1e9 mask

        # softmax over keys (max-subtracted; EUP approx reciprocal for denom)
        smax = jnp.max(scores, axis=-1, keepdims=True)
        e = jnp.exp(scores - smax)
        p = e * pl.reciprocal(jnp.sum(e, axis=-1, keepdims=True), approx=True)

        head_outs.append(
            jnp.dot(p.astype(cd), vh, preferred_element_type=jnp.float32)
        )

    # Concatenated-heads context stays in VMEM/registers -> fused output proj.
    ctx = jnp.concatenate(head_outs, axis=-1)      # (Sq, D)
    out = jnp.dot(ctx.astype(cd), wo_ref[...], preferred_element_type=jnp.float32)
    out = out + bo_ref[...]

    o_ref[0] = out.astype(o_ref.dtype)             # lane-dense (Sq, D) store


# ------------------------ MultiHeadAttention glue --------------------------- #
def multi_head_attention(params, query, key, value, mask=None, *, head,
                         compute_dtype=jnp.bfloat16):
    """Forward pass of the PyTorch MultiHeadAttention module.

    query/key/value: (B, S, D) fp32. Linear weights are (in, out) so the kernel
    computes y = x @ W + b (W pre-transposed vs. PyTorch). Mask may be None,
    (B, 1, Sk), or (B, 1, {1,Sq}, Sk); zeros are masked out with -1e9.
    """
    B, Sq, D = query.shape
    Sk = key.shape[1]
    assert D % head == 0, "dim_model must be divisible by head"
    dk = D // head
    scale = 1.0 / math.sqrt(dk)

    # Precompute the additive mask bias (0 keep / -1e9 drop), broadcastable
    # over heads and (optionally) query rows.
    if mask is None:
        bias = jnp.zeros((B, 1, Sk), dtype=jnp.float32)
    else:
        m = mask[:, 0] if mask.ndim == 4 else mask          # -> (B, 1 or Sq, Sk)
        bias = jnp.where(m == 0, jnp.float32(-1e9), jnp.float32(0.0))
    Sq_b = bias.shape[1]

    cd = compute_dtype
    wq = params["wq"].astype(cd); wk = params["wk"].astype(cd)
    wv = params["wv"].astype(cd); wo = params["wo"].astype(cd)
    bq = params["bq"].astype(jnp.float32); bk = params["bk"].astype(jnp.float32)
    bv = params["bv"].astype(jnp.float32); bo = params["bo"].astype(jnp.float32)

    kern = functools.partial(
        _mha_fused_kernel, head=head, scale=scale, compute_dtype=cd
    )

    # Advisory cost estimate: 4 projection matmuls + 2 attention matmuls/head.
    flops = B * (4 * Sq * D * D + 4 * Sk * D * D + 4 * head * Sq * Sk * dk)
    transcendentals = B * head * Sq * Sk
    w_bytes = 4 * D * D * jnp.dtype(cd).itemsize + 4 * D * 4
    bytes_accessed = 4 * B * (2 * Sq * D + 2 * Sk * D + Sq_b * Sk) + w_bytes

    w_spec = pl.BlockSpec((D, D), lambda b: (0, 0))
    b_spec = pl.BlockSpec((1, D), lambda b: (0, 0))

    return pl.pallas_call(
        kern,
        out_shape=jax.ShapeDtypeStruct((B, Sq, D), query.dtype),
        grid_spec=pltpu.PrefetchScalarGridSpec(
            num_scalar_prefetch=0,
            grid=(B,),
            in_specs=[
                pl.BlockSpec((1, Sq, D), lambda b: (b, 0, 0)),      # query
                pl.BlockSpec((1, Sk, D), lambda b: (b, 0, 0)),      # key
                pl.BlockSpec((1, Sk, D), lambda b: (b, 0, 0)),      # value
                pl.BlockSpec((1, Sq_b, Sk), lambda b: (b, 0, 0)),   # mask bias
                w_spec, b_spec,                                     # wq, bq
                w_spec, b_spec,                                     # wk, bk
                w_spec, b_spec,                                     # wv, bv
                w_spec, b_spec,                                     # wo, bo
            ],
            out_specs=pl.BlockSpec((1, Sq, D), lambda b: (b, 0, 0)),
        ),
        compiler_params=pltpu.CompilerParams(
            dimension_semantics=("parallel",),
            vmem_limit_bytes=32 * 1024 * 1024,
        ),
        cost_estimate=pl.CostEstimate(
            flops=flops,
            transcendentals=transcendentals,
            bytes_accessed=bytes_accessed,
        ),
    )(query, key, value, bias, wq, bq, wk, bk, wv, bv, wo, bo)


# ------------------------------ Reference ----------------------------------- #
def _reference(params, query, key, value, mask, head):
    B, Sq, D = query.shape
    Sk = key.shape[1]
    dim_k = D // head
    lin = lambda x, w, b: x @ w + b
    q = lin(query, params["wq"], params["bq"]).reshape(B, Sq, head, dim_k).transpose(0, 2, 1, 3)
    k = lin(key, params["wk"], params["bk"]).reshape(B, Sk, head, dim_k).transpose(0, 2, 1, 3)
    v = lin(value, params["wv"], params["bv"]).reshape(B, Sk, head, dim_k).transpose(0, 2, 1, 3)
    scores = jnp.einsum("bhqd,bhkd->bhqk", q, k,
                        preferred_element_type=jnp.float32) / math.sqrt(dim_k)
    m4 = mask[:, None, :, :] if mask.ndim == 3 else mask
    scores = jnp.where(m4 == 0, -1e9, scores)
    p = jax.nn.softmax(scores, axis=-1)
    x = jnp.einsum("bhqk,bhkd->bhqd", p, v, preferred_element_type=jnp.float32)
    x = x.transpose(0, 2, 1, 3).reshape(B, Sq, D)
    return lin(x, params["wo"], params["bo"])


if __name__ == "__main__":
    B, S, D, H = 2, 8, 32, 4       # batch, seq, dim_model, heads  (dim_k = 8)
    bound = 1.0 / math.sqrt(D)     # PyTorch nn.Linear default init range

    keys = jax.random.split(jax.random.PRNGKey(0), 12)
    u = lambda kk, shape: jax.random.uniform(kk, shape, jnp.float32, -bound, bound)

    params = {
        "wq": u(keys[0], (D, D)), "bq": u(keys[1], (1, D)),
        "wk": u(keys[2], (D, D)), "bk": u(keys[3], (1, D)),
        "wv": u(keys[4], (D, D)), "bv": u(keys[5], (1, D)),
        "wo": u(keys[6], (D, D)), "bo": u(keys[7], (1, D)),
    }

    query = jax.random.normal(keys[8], (B, S, D), jnp.float32)
    key_in = jax.random.normal(keys[9], (B, S, D), jnp.float32)
    value = jax.random.normal(keys[10], (B, S, D), jnp.float32)
    # padding-style mask, shape (B, 1, S) like the PyTorch module's 3-D case
    mask = (jax.random.uniform(keys[11], (B, 1, S)) > 0.2).astype(jnp.float32)

    ref = _reference(params, query, key_in, value, mask, H)

    # fp32 compute path: tight numerical check.
    out_f32 = multi_head_attention(params, query, key_in, value, mask=mask,
                                   head=H, compute_dtype=jnp.float32)
    out_f32 = jax.block_until_ready(out_f32)
    assert out_f32.shape == (B, S, D)
    assert jnp.allclose(out_f32, ref, atol=1e-2, rtol=1e-2), \
        "fp32 path mismatch vs pure-JAX reference"

    # bf16 MXU path (default): looser tolerance for reduced-precision matmuls.
    out_bf16 = multi_head_attention(params, query, key_in, value, mask=mask,
                                    head=H, compute_dtype=jnp.bfloat16)
    out_bf16 = jax.block_until_ready(out_bf16)
    assert out_bf16.shape == (B, S, D)
    assert jnp.allclose(out_bf16, ref, atol=1e-1, rtol=1e-1), \
        "bf16 path mismatch vs pure-JAX reference"

    print("KERNEL_OK")
</pallas_src>

<mosaic_0001>
module attributes {stable_mosaic.version = 11 : i64} {
  func.func @_mha_fused_kernel(%arg0: i32, %arg1: memref<1x8x32xf32, #tpu.memory_space<vmem>>, %arg2: memref<1x8x32xf32, #tpu.memory_space<vmem>>, %arg3: memref<1x8x32xf32, #tpu.memory_space<vmem>>, %arg4: memref<1x1x8xf32, #tpu.memory_space<vmem>>, %arg5: memref<32x32xf32, #tpu.memory_space<vmem>>, %arg6: memref<1x32xf32, #tpu.memory_space<vmem>>, %arg7: memref<32x32xf32, #tpu.memory_space<vmem>>, %arg8: memref<1x32xf32, #tpu.memory_space<vmem>>, %arg9: memref<32x32xf32, #tpu.memory_space<vmem>>, %arg10: memref<1x32xf32, #tpu.memory_space<vmem>>, %arg11: memref<32x32xf32, #tpu.memory_space<vmem>>, %arg12: memref<1x32xf32, #tpu.memory_space<vmem>>, %arg13: memref<1x8x32xf32, #tpu.memory_space<vmem>>) attributes {dimension_semantics = [#tpu.dimension_semantics<parallel>], iteration_bounds = array<i64: 2>, scalar_prefetch = 0 : i64, scratch_operands = 0 : i64, tpu.core_type = #tpu.core_type<tc>, window_params = [{transform_indices = @transform_0, window_bounds = array<i64: 1, 8, 32>}, {transform_indices = @transform_1, window_bounds = array<i64: 1, 8, 32>}, {transform_indices = @transform_2, window_bounds = array<i64: 1, 8, 32>}, {transform_indices = @transform_3, window_bounds = array<i64: 1, 1, 8>}, {pipeline_mode = #tpu.pipeline_mode<synchronous>, transform_indices = @transform_4, window_bounds = array<i64: 32, 32>}, {pipeline_mode = #tpu.pipeline_mode<synchronous>, transform_indices = @transform_5, window_bounds = array<i64: 1, 32>}, {pipeline_mode = #tpu.pipeline_mode<synchronous>, transform_indices = @transform_6, window_bounds = array<i64: 32, 32>}, {pipeline_mode = #tpu.pipeline_mode<synchronous>, transform_indices = @transform_7, window_bounds = array<i64: 1, 32>}, {pipeline_mode = #tpu.pipeline_mode<synchronous>, transform_indices = @transform_8, window_bounds = array<i64: 32, 32>}, {pipeline_mode = #tpu.pipeline_mode<synchronous>, transform_indices = @transform_9, window_bounds = array<i64: 1, 32>}, {pipeline_mode = #tpu.pipeline_mode<synchronous>, transform_indices = @transform_10, window_bounds = array<i64: 32, 32>}, {pipeline_mode = #tpu.pipeline_mode<synchronous>, transform_indices = @transform_11, window_bounds = array<i64: 1, 32>}, {transform_indices = @transform_12, window_bounds = array<i64: 1, 8, 32>}]} {
    %c0 = arith.constant 0 : index
    %c0_0 = arith.constant 0 : index
    %c0_1 = arith.constant 0 : index
    %0 = vector.load %arg1[%c0, %c0_0, %c0_1] : memref<1x8x32xf32, #tpu.memory_space<vmem>>, vector<1x8x32xf32>
    %1 = vector.shape_cast %0 : vector<1x8x32xf32> to vector<8x32xf32>
    %c0_2 = arith.constant 0 : index
    %c0_3 = arith.constant 0 : index
    %c0_4 = arith.constant 0 : index
    %2 = vector.load %arg2[%c0_2, %c0_3, %c0_4] : memref<1x8x32xf32, #tpu.memory_space<vmem>>, vector<1x8x32xf32>
    %3 = vector.shape_cast %2 : vector<1x8x32xf32> to vector<8x32xf32>
    %c0_5 = arith.constant 0 : index
    %c0_6 = arith.constant 0 : index
    %c0_7 = arith.constant 0 : index
    %4 = vector.load %arg3[%c0_5, %c0_6, %c0_7] : memref<1x8x32xf32, #tpu.memory_space<vmem>>, vector<1x8x32xf32>
    %5 = vector.shape_cast %4 : vector<1x8x32xf32> to vector<8x32xf32>
    %c0_8 = arith.constant 0 : index
    %c0_9 = arith.constant 0 : index
    %6 = vector.load %arg5[%c0_8, %c0_9] : memref<32x32xf32, #tpu.memory_space<vmem>>, vector<32x32xf32>
    %cst = arith.constant dense<0.000000e+00> : vector<8x32xf32>
    %7 = tpu.matmul %1, %6, %cst {dimension_numbers = #tpu.dot_dimension_numbers<[1], [0], [0], [1], [0, 0, 1, 1], [], []>} : vector<8x32xf32>, vector<32x32xf32>, vector<8x32xf32> -> vector<8x32xf32>
    %c0_10 = arith.constant 0 : index
    %c0_11 = arith.constant 0 : index
    %8 = vector.load %arg6[%c0_10, %c0_11] : memref<1x32xf32, #tpu.memory_space<vmem>>, vector<1x32xf32>
    %9 = vector.broadcast %8 : vector<1x32xf32> to vector<8x32xf32>
    %10 = arith.addf %7, %9 : vector<8x32xf32>
    %c0_12 = arith.constant 0 : index
    %c0_13 = arith.constant 0 : index
    %11 = vector.load %arg7[%c0_12, %c0_13] : memref<32x32xf32, #tpu.memory_space<vmem>>, vector<32x32xf32>
    %cst_14 = arith.constant dense<0.000000e+00> : vector<8x32xf32>
    %12 = tpu.matmul %3, %11, %cst_14 {dimension_numbers = #tpu.dot_dimension_numbers<[1], [0], [0], [1], [0, 0, 1, 1], [], []>} : vector<8x32xf32>, vector<32x32xf32>, vector<8x32xf32> -> vector<8x32xf32>
    %c0_15 = arith.constant 0 : index
    %c0_16 = arith.constant 0 : index
    %13 = vector.load %arg8[%c0_15, %c0_16] : memref<1x32xf32, #tpu.memory_space<vmem>>, vector<1x32xf32>
    %14 = vector.broadcast %13 : vector<1x32xf32> to vector<8x32xf32>
    %15 = arith.addf %12, %14 : vector<8x32xf32>
    %c0_17 = arith.constant 0 : index
    %c0_18 = arith.constant 0 : index
    %16 = vector.load %arg9[%c0_17, %c0_18] : memref<32x32xf32, #tpu.memory_space<vmem>>, vector<32x32xf32>
    %cst_19 = arith.constant dense<0.000000e+00> : vector<8x32xf32>
    %17 = tpu.matmul %5, %16, %cst_19 {dimension_numbers = #tpu.dot_dimension_numbers<[1], [0], [0], [1], [0, 0, 1, 1], [], []>} : vector<8x32xf32>, vector<32x32xf32>, vector<8x32xf32> -> vector<8x32xf32>
    %c0_20 = arith.constant 0 : index
    %c0_21 = arith.constant 0 : index
    %18 = vector.load %arg10[%c0_20, %c0_21] : memref<1x32xf32, #tpu.memory_space<vmem>>, vector<1x32xf32>
    %19 = vector.broadcast %18 : vector<1x32xf32> to vector<8x32xf32>
    %20 = arith.addf %17, %19 : vector<8x32xf32>
    %cst_22 = arith.constant 0.353553385 : f32
    %21 = vector.broadcast %cst_22 : f32 to vector<8x32xf32>
    %22 = arith.mulf %10, %21 : vector<8x32xf32>
    %c0_23 = arith.constant 0 : index
    %c0_24 = arith.constant 0 : index
    %c0_25 = arith.constant 0 : index
    %23 = vector.load %arg4[%c0_23, %c0_24, %c0_25] : memref<1x1x8xf32, #tpu.memory_space<vmem>>, vector<1x1x8xf32>
    %24 = vector.shape_cast %23 : vector<1x1x8xf32> to vector<1x8xf32>
    %25 = vector.extract_strided_slice %22 {offsets = [0, 0], sizes = [8, 8], strides = [1, 1]} : vector<8x32xf32> to vector<8x8xf32>
    %26 = vector.extract_strided_slice %15 {offsets = [0, 0], sizes = [8, 8], strides = [1, 1]} : vector<8x32xf32> to vector<8x8xf32>
    %27 = vector.extract_strided_slice %20 {offsets = [0, 0], sizes = [8, 8], strides = [1, 1]} : vector<8x32xf32> to vector<8x8xf32>
    %cst_26 = arith.constant dense<0.000000e+00> : vector<8x8xf32>
    %28 = tpu.matmul %25, %26, %cst_26 {dimension_numbers = #tpu.dot_dimension_numbers<[1], [1], [0], [0], [0, 0, 1, 0], [], []>} : vector<8x8xf32>, vector<8x8xf32>, vector<8x8xf32> -> vector<8x8xf32>
    %29 = vector.broadcast %24 : vector<1x8xf32> to vector<8x8xf32>
    %30 = arith.addf %28, %29 : vector<8x8xf32>
    %cst_27 = arith.constant dense<0xFF800000> : vector<8xf32>
    %31 = vector.multi_reduction <maximumf>, %30, %cst_27 [1] : vector<8x8xf32> to vector<8xf32>
    %32 = vector.shape_cast %31 : vector<8xf32> to vector<8x1xf32>
    %33 = vector.broadcast %32 : vector<8x1xf32> to vector<8x8xf32>
    %34 = arith.subf %30, %33 : vector<8x8xf32>
    %35 = math.exp %34 : vector<8x8xf32>
    %cst_28 = arith.constant dense<0.000000e+00> : vector<8xf32>
    %36 = vector.multi_reduction <add>, %35, %cst_28 [1] : vector<8x8xf32> to vector<8xf32>
    %37 = vector.shape_cast %36 : vector<8xf32> to vector<8x1xf32>
    %38 = tpu.reciprocal %37 {approx = true} : vector<8x1xf32> -> vector<8x1xf32>
    %39 = vector.broadcast %38 : vector<8x1xf32> to vector<8x8xf32>
    %40 = arith.mulf %35, %39 : vector<8x8xf32>
    %cst_29 = arith.constant dense<0.000000e+00> : vector<8x8xf32>
    %41 = tpu.matmul %40, %27, %cst_29 {dimension_numbers = #tpu.dot_dimension_numbers<[1], [0], [0], [1], [0, 0, 1, 1], [], []>} : vector<8x8xf32>, vector<8x8xf32>, vector<8x8xf32> -> vector<8x8xf32>
    %42 = vector.extract_strided_slice %22 {offsets = [0, 8], sizes = [8, 8], strides = [1, 1]} : vector<8x32xf32> to vector<8x8xf32>
    %43 = vector.extract_strided_slice %15 {offsets = [0, 8], sizes = [8, 8], strides = [1, 1]} : vector<8x32xf32> to vector<8x8xf32>
    %44 = vector.extract_strided_slice %20 {offsets = [0, 8], sizes = [8, 8], strides = [1, 1]} : vector<8x32xf32> to vector<8x8xf32>
    %cst_30 = arith.constant dense<0.000000e+00> : vector<8x8xf32>
    %45 = tpu.matmul %42, %43, %cst_30 {dimension_numbers = #tpu.dot_dimension_numbers<[1], [1], [0], [0], [0, 0, 1, 0], [], []>} : vector<8x8xf32>, vector<8x8xf32>, vector<8x8xf32> -> vector<8x8xf32>
    %46 = vector.broadcast %24 : vector<1x8xf32> to vector<8x8xf32>
    %47 = arith.addf %45, %46 : vector<8x8xf32>
    %cst_31 = arith.constant dense<0xFF800000> : vector<8xf32>
    %48 = vector.multi_reduction <maximumf>, %47, %cst_31 [1] : vector<8x8xf32> to vector<8xf32>
    %49 = vector.shape_cast %48 : vector<8xf32> to vector<8x1xf32>
    %50 = vector.broadcast %49 : vector<8x1xf32> to vector<8x8xf32>
    %51 = arith.subf %47, %50 : vector<8x8xf32>
    %52 = math.exp %51 : vector<8x8xf32>
    %cst_32 = arith.constant dense<0.000000e+00> : vector<8xf32>
    %53 = vector.multi_reduction <add>, %52, %cst_32 [1] : vector<8x8xf32> to vector<8xf32>
    %54 = vector.shape_cast %53 : vector<8xf32> to vector<8x1xf32>
    %55 = tpu.reciprocal %54 {approx = true} : vector<8x1xf32> -> vector<8x1xf32>
    %56 = vector.broadcast %55 : vector<8x1xf32> to vector<8x8xf32>
    %57 = arith.mulf %52, %56 : vector<8x8xf32>
    %cst_33 = arith.constant dense<0.000000e+00> : vector<8x8xf32>
    %58 = tpu.matmul %57, %44, %cst_33 {dimension_numbers = #tpu.dot_dimension_numbers<[1], [0], [0], [1], [0, 0, 1, 1], [], []>} : vector<8x8xf32>, vector<8x8xf32>, vector<8x8xf32> -> vector<8x8xf32>
    %59 = vector.extract_strided_slice %22 {offsets = [0, 16], sizes = [8, 8], strides = [1, 1]} : vector<8x32xf32> to vector<8x8xf32>
    %60 = vector.extract_strided_slice %15 {offsets = [0, 16], sizes = [8, 8], strides = [1, 1]} : vector<8x32xf32> to vector<8x8xf32>
    %61 = vector.extract_strided_slice %20 {offsets = [0, 16], sizes = [8, 8], strides = [1, 1]} : vector<8x32xf32> to vector<8x8xf32>
    %cst_34 = arith.constant dense<0.000000e+00> : vector<8x8xf32>
    %62 = tpu.matmul %59, %60, %cst_34 {dimension_numbers = #tpu.dot_dimension_numbers<[1], [1], [0], [0], [0, 0, 1, 0], [], []>} : vector<8x8xf32>, vector<8x8xf32>, vector<8x8xf32> -> vector<8x8xf32>
    %63 = vector.broadcast %24 : vector<1x8xf32> to vector<8x8xf32>
    %64 = arith.addf %62, %63 : vector<8x8xf32>
    %cst_35 = arith.constant dense<0xFF800000> : vector<8xf32>
    %65 = vector.multi_reduction <maximumf>, %64, %cst_35 [1] : vector<8x8xf32> to vector<8xf32>
    %66 = vector.shape_cast %65 : vector<8xf32> to vector<8x1xf32>
    %67 = vector.broadcast %66 : vector<8x1xf32> to vector<8x8xf32>
    %68 = arith.subf %64, %67 : vector<8x8xf32>
    %69 = math.exp %68 : vector<8x8xf32>
    %cst_36 = arith.constant dense<0.000000e+00> : vector<8xf32>
    %70 = vector.multi_reduction <add>, %69, %cst_36 [1] : vector<8x8xf32> to vector<8xf32>
    %71 = vector.shape_cast %70 : vector<8xf32> to vector<8x1xf32>
    %72 = tpu.reciprocal %71 {approx = true} : vector<8x1xf32> -> vector<8x1xf32>
    %73 = vector.broadcast %72 : vector<8x1xf32> to vector<8x8xf32>
    %74 = arith.mulf %69, %73 : vector<8x8xf32>
    %cst_37 = arith.constant dense<0.000000e+00> : vector<8x8xf32>
    %75 = tpu.matmul %74, %61, %cst_37 {dimension_numbers = #tpu.dot_dimension_numbers<[1], [0], [0], [1], [0, 0, 1, 1], [], []>} : vector<8x8xf32>, vector<8x8xf32>, vector<8x8xf32> -> vector<8x8xf32>
    %76 = vector.extract_strided_slice %22 {offsets = [0, 24], sizes = [8, 8], strides = [1, 1]} : vector<8x32xf32> to vector<8x8xf32>
    %77 = vector.extract_strided_slice %15 {offsets = [0, 24], sizes = [8, 8], strides = [1, 1]} : vector<8x32xf32> to vector<8x8xf32>
    %78 = vector.extract_strided_slice %20 {offsets = [0, 24], sizes = [8, 8], strides = [1, 1]} : vector<8x32xf32> to vector<8x8xf32>
    %cst_38 = arith.constant dense<0.000000e+00> : vector<8x8xf32>
    %79 = tpu.matmul %76, %77, %cst_38 {dimension_numbers = #tpu.dot_dimension_numbers<[1], [1], [0], [0], [0, 0, 1, 0], [], []>} : vector<8x8xf32>, vector<8x8xf32>, vector<8x8xf32> -> vector<8x8xf32>
    %80 = vector.broadcast %24 : vector<1x8xf32> to vector<8x8xf32>
    %81 = arith.addf %79, %80 : vector<8x8xf32>
    %cst_39 = arith.constant dense<0xFF800000> : vector<8xf32>
    %82 = vector.multi_reduction <maximumf>, %81, %cst_39 [1] : vector<8x8xf32> to vector<8xf32>
    %83 = vector.shape_cast %82 : vector<8xf32> to vector<8x1xf32>
    %84 = vector.broadcast %83 : vector<8x1xf32> to vector<8x8xf32>
    %85 = arith.subf %81, %84 : vector<8x8xf32>
    %86 = math.exp %85 : vector<8x8xf32>
    %cst_40 = arith.constant dense<0.000000e+00> : vector<8xf32>
    %87 = vector.multi_reduction <add>, %86, %cst_40 [1] : vector<8x8xf32> to vector<8xf32>
    %88 = vector.shape_cast %87 : vector<8xf32> to vector<8x1xf32>
    %89 = tpu.reciprocal %88 {approx = true} : vector<8x1xf32> -> vector<8x1xf32>
    %90 = vector.broadcast %89 : vector<8x1xf32> to vector<8x8xf32>
    %91 = arith.mulf %86, %90 : vector<8x8xf32>
    %cst_41 = arith.constant dense<0.000000e+00> : vector<8x8xf32>
    %92 = tpu.matmul %91, %78, %cst_41 {dimension_numbers = #tpu.dot_dimension_numbers<[1], [0], [0], [1], [0, 0, 1, 1], [], []>} : vector<8x8xf32>, vector<8x8xf32>, vector<8x8xf32> -> vector<8x8xf32>
    %93 = tpu.concatenate %41, %58, %75, %92 in 1 : vector<8x8xf32>, vector<8x8xf32>, vector<8x8xf32>, vector<8x8xf32> -> vector<8x32xf32>
    %c0_42 = arith.constant 0 : index
    %c0_43 = arith.constant 0 : index
    %94 = vector.load %arg11[%c0_42, %c0_43] : memref<32x32xf32, #tpu.memory_space<vmem>>, vector<32x32xf32>
    %cst_44 = arith.constant dense<0.000000e+00> : vector<8x32xf32>
    %95 = tpu.matmul %93, %94, %cst_44 {dimension_numbers = #tpu.dot_dimension_numbers<[1], [0], [0], [1], [0, 0, 1, 1], [], []>} : vector<8x32xf32>, vector<32x32xf32>, vector<8x32xf32> -> vector<8x32xf32>
    %c0_45 = arith.constant 0 : index
    %c0_46 = arith.constant 0 : index
    %96 = vector.load %arg12[%c0_45, %c0_46] : memref<1x32xf32, #tpu.memory_space<vmem>>, vector<1x32xf32>
    %97 = vector.broadcast %96 : vector<1x32xf32> to vector<8x32xf32>
    %98 = arith.addf %95, %97 : vector<8x32xf32>
    %c0_47 = arith.constant 0 : index
    %c0_48 = arith.constant 0 : index
    %c0_49 = arith.constant 0 : index
    %99 = vector.load %arg13[%c0_47, %c0_48, %c0_49] : memref<1x8x32xf32, #tpu.memory_space<vmem>>, vector<1x8x32xf32>
    %100 = vector.shape_cast %99 : vector<1x8x32xf32> to vector<8x32xf32>
    %101 = vector.shape_cast %98 : vector<8x32xf32> to vector<1x8x32xf32>
    tpu.vector_store %arg13[%c0_47, %c0_48, %c0_49], %101 {strides = array<i32>} : memref<1x8x32xf32, #tpu.memory_space<vmem>>, vector<1x8x32xf32>,
    return
  }
  func.func @transform_0(%arg0: i32) -> (i32, i32, i32) {
    %c0_i32 = arith.constant 0 : i32
    %c0_i32_0 = arith.constant 0 : i32
    %c0_i32_1 = arith.constant 0 : i32
    return %arg0, %c0_i32, %c0_i32_0 : i32, i32, i32
  }
  func.func @transform_1(%arg0: i32) -> (i32, i32, i32) {
    %c0_i32 = arith.constant 0 : i32
    %c0_i32_0 = arith.constant 0 : i32
    %c0_i32_1 = arith.constant 0 : i32
    return %arg0, %c0_i32, %c0_i32_0 : i32, i32, i32
  }
  func.func @transform_2(%arg0: i32) -> (i32, i32, i32) {
    %c0_i32 = arith.constant 0 : i32
    %c0_i32_0 = arith.constant 0 : i32
    %c0_i32_1 = arith.constant 0 : i32
    return %arg0, %c0_i32, %c0_i32_0 : i32, i32, i32
  }
  func.func @transform_3(%arg0: i32) -> (i32, i32, i32) {
    %c0_i32 = arith.constant 0 : i32
    %c0_i32_0 = arith.constant 0 : i32
    %c0_i32_1 = arith.constant 0 : i32
    return %arg0, %c0_i32, %c0_i32_0 : i32, i32, i32
  }
  func.func @transform_4(%arg0: i32) -> (i32, i32) {
    %c0_i32 = arith.constant 0 : i32
    %c0_i32_0 = arith.constant 0 : i32
    %c0_i32_1 = arith.constant 0 : i32
    return %c0_i32, %c0_i32_0 : i32, i32
  }
  func.func @transform_5(%arg0: i32) -> (i32, i32) {
    %c0_i32 = arith.constant 0 : i32
    %c0_i32_0 = arith.constant 0 : i32
    %c0_i32_1 = arith.constant 0 : i32
    return %c0_i32, %c0_i32_0 : i32, i32
  }
  func.func @transform_6(%arg0: i32) -> (i32, i32) {
    %c0_i32 = arith.constant 0 : i32
    %c0_i32_0 = arith.constant 0 : i32
    %c0_i32_1 = arith.constant 0 : i32
    return %c0_i32, %c0_i32_0 : i32, i32
  }
  func.func @transform_7(%arg0: i32) -> (i32, i32) {
    %c0_i32 = arith.constant 0 : i32
    %c0_i32_0 = arith.constant 0 : i32
    %c0_i32_1 = arith.constant 0 : i32
    return %c0_i32, %c0_i32_0 : i32, i32
  }
  func.func @transform_8(%arg0: i32) -> (i32, i32) {
    %c0_i32 = arith.constant 0 : i32
    %c0_i32_0 = arith.constant 0 : i32
    %c0_i32_1 = arith.constant 0 : i32
    return %c0_i32, %c0_i32_0 : i32, i32
  }
  func.func @transform_9(%arg0: i32) -> (i32, i32) {
    %c0_i32 = arith.constant 0 : i32
    %c0_i32_0 = arith.constant 0 : i32
    %c0_i32_1 = arith.constant 0 : i32
    return %c0_i32, %c0_i32_0 : i32, i32
  }
  func.func @transform_10(%arg0: i32) -> (i32, i32) {
    %c0_i32 = arith.constant 0 : i32
    %c0_i32_0 = arith.constant 0 : i32
    %c0_i32_1 = arith.constant 0 : i32
    return %c0_i32, %c0_i32_0 : i32, i32
  }
  func.func @transform_11(%arg0: i32) -> (i32, i32) {
    %c0_i32 = arith.constant 0 : i32
    %c0_i32_0 = arith.constant 0 : i32
    %c0_i32_1 = arith.constant 0 : i32
    return %c0_i32, %c0_i32_0 : i32, i32
  }
  func.func @transform_12(%arg0: i32) -> (i32, i32, i32) {
    %c0_i32 = arith.constant 0 : i32
    %c0_i32_0 = arith.constant 0 : i32
    %c0_i32_1 = arith.constant 0 : i32
    return %arg0, %c0_i32, %c0_i32_0 : i32, i32, i32
  }
}

</mosaic_0001>

<llo_original>
// kernel: tpu_custom_call.1
$region0: #{tpu_custom_call.1}
  #allocation0 [shape = 'u32[]', space=smem, size = 0x4, offset = 0x4, fixed_abs, tag = 'smem constant byte address 0x4 - core index']
  #allocation1 [shape = 'u32[144,128]{1,0:T(1,128)}', space=vmem, size = 0x12000, scoped, tag = 'internal scratch']
  %s0 = inlined_call_operand.hbm [shape: f32[2,8,32], index: 0, kind: input, shape index: {}]
  %s1 = inlined_call_operand.hbm [shape: f32[2,8,32], index: 1, kind: input, shape index: {}]
  %s2 = inlined_call_operand.hbm [shape: f32[2,8,32], index: 2, kind: input, shape index: {}]
  %s3 = inlined_call_operand.vmem [shape: f32[2,1,8], index: 3, kind: input, shape index: {}]
  %s4 = inlined_call_operand.hbm [shape: f32[32,32], index: 4, kind: input, shape index: {}]
  %s5 = inlined_call_operand.vmem [shape: f32[1,32], index: 5, kind: input, shape index: {}]
  %s6 = inlined_call_operand.hbm [shape: f32[32,32], index: 6, kind: input, shape index: {}]
  %s7 = inlined_call_operand.vmem [shape: f32[1,32], index: 7, kind: input, shape index: {}]
  %s8 = inlined_call_operand.hbm [shape: f32[32,32], index: 8, kind: input, shape index: {}]
  %s9 = inlined_call_operand.vmem [shape: f32[1,32], index: 9, kind: input, shape index: {}]
  %s10 = inlined_call_operand.hbm [shape: f32[32,32], index: 10, kind: input, shape index: {}]
  %s11 = inlined_call_operand.vmem [shape: f32[1,32], index: 11, kind: input, shape index: {}]
  %s12 = inlined_call_operand.hbm [shape: f32[2,8,32], index: 12, kind: output, shape index: {}]
  %s13 = sld [smem:[#allocation0]]
  $region109: #{tpu_custom_call.1} parent=0
    _
  %s15 = ssub.s32 1, %s13
  %s16 = scalar_select 0, %s15, %s13
  $region1: #{tpu_custom_call.1} parent=0
    #allocation2 [shape = 'u8[8192]{0}', space=vmem, size = 0x2000, scoped, tag = 'input window, operand 0']
    #allocation3 [shape = 's32[2]{0}', space=sflag, size = 0x8, scoped, tag = 'scoped memory for tpu_custom_call.1']
    #allocation4 [shape = 's32[2]{0}', space=sflag, size = 0x8, scoped, tag = 'scoped memory for tpu_custom_call.1']
    #allocation5 [shape = 'u8[8192]{0}', space=vmem, size = 0x2000, scoped, tag = 'input window, operand 1']
    #allocation6 [shape = 's32[2]{0}', space=sflag, size = 0x8, scoped, tag = 'scoped memory for tpu_custom_call.1']
    #allocation7 [shape = 'u8[8192]{0}', space=vmem, size = 0x2000, scoped, tag = 'input window, operand 2']
    #allocation8 [shape = 'u8[16384]{0}', space=vmem, size = 0x4000, scoped, tag = 'input window, operand 4, single buffered']
    #allocation9 [shape = 's32[1]{0}', space=sflag, size = 0x4, scoped, tag = 'scoped memory for tpu_custom_call.1']
    #allocation10 [shape = 'u8[16384]{0}', space=vmem, size = 0x4000, scoped, tag = 'input window, operand 6, single buffered']
    #allocation11 [shape = 'u8[16384]{0}', space=vmem, size = 0x4000, scoped, tag = 'input window, operand 8, single buffered']
    #allocation12 [shape = 's32[1]{0}', space=sflag, size = 0x4, scoped, tag = 'scoped memory for tpu_custom_call.1']
    #allocation13 [shape = 'u8[16384]{0}', space=vmem, size = 0x4000, scoped, tag = 'input window, operand 10, single buffered']
    #allocation14 [shape = 'u8[8192]{0}', space=vmem, size = 0x2000, scoped, tag = 'output window, operand 0']
    %17 = vsyncpa [#allocation3], 0
    %s18 = scalar_lea.sflag [#allocation3], 1
    %19 = vsyncpa %s18, 0
    %20 = vsyncpa [#allocation6], 0
    %s21 = scalar_lea.sflag [#allocation6], 1
    %22 = vsyncpa %s21, 0
    %23 = vsyncpa [#allocation9], 0
    %24 = vsyncpa [#allocation12], 0
    %25 = vsyncpa [#allocation4], 0
    %s26 = scalar_lea.sflag [#allocation4], 1
    %27 = vsyncpa %s26, 0
    loop: start=0, step=1, limit=4
    $region2: #{tpu_custom_call.1} parent=1 // loop_pre_header
      _
    $region3: #{tpu_custom_call.1} parent=1 // loop_header
      %s29 = sphi 0, %s33
      %p30 = scmp.ge.s32.totalorder %s29, 4
      %s39 = sphi 0, %s41
      %s42 = sphi 0, %s39
      %s43 = sphi 0, %s42
      %s59 = sphi 0, %s43
      %s65 = sphi 0, %s67
      %s68 = sphi 0, %s65
      %s69 = sphi 0, %s68
      %s85 = sphi 0, %s69
      %s91 = sphi 0, %s93
      %s94 = sphi 0, %s91
      %s95 = sphi 0, %s94
      %s111 = sphi 0, %s95
      %s117 = sphi 0, %s119
      %s120 = sphi 0, %s117
      %s121 = sphi 0, %s120
      %s137 = sphi 0, %s121
      %s141 = sphi 0, %s141
      %s143 = sphi 0, %s141
      %s144 = sphi 0, %s143
      %s158 = sphi 0, %s144
      %s162 = sphi 0, %s162
      %s164 = sphi 0, %s162
      %s165 = sphi 0, %s164
      %s179 = sphi 0, %s165
      %s183 = sphi 0, %s183
      %s185 = sphi 0, %s183
      %s186 = sphi 0, %s185
      %s200 = sphi 0, %s186
      %s204 = sphi 0, %s204
      %s206 = sphi 0, %s204
      %s207 = sphi 0, %s206
      %s221 = sphi 0, %s207
      %s225 = sphi 0, %s225
      %s227 = sphi 0, %s225
      %s228 = sphi 0, %s227
      %s242 = sphi 0, %s228
      %s246 = sphi 0, %s246
      %s248 = sphi 0, %s246
      %s249 = sphi 0, %s248
      %s263 = sphi 0, %s249
      %s267 = sphi 0, %s267
      %s269 = sphi 0, %s267
      %s270 = sphi 0, %s269
      %s284 = sphi 0, %s270
      %s288 = sphi 0, %s288
      %s290 = sphi 0, %s288
      %s291 = sphi 0, %s290
      %s305 = sphi 0, %s291
      %s311 = sphi 0, %s313
      %s314 = sphi 0, %s311
      %s315 = sphi 0, %s314
      %s331 = sphi 0, %s315
    $region4: #{tpu_custom_call.1} parent=1 // loop_header_branch
      %32 = sbr.rel (%p30) target = $region8
    $region5: #{tpu_custom_call.1} parent=1 // loop_body
      %s34 = ssub.s32 %s29, 1
      %s35 = ssub.s32 %s29, 2
      %s36 = sadd.s32 %s29, 1
      %s37 = ssub.s32 %s29, %s36
      %p38 = scmp.eq.s32.totalorder %s37, 0
      %s40 = sadd.s32 %s39, 1
      %s41 = scalar_select %p38, %s39, %s40
      %p44 = pneg %p38
      %p45 = scmp.eq.s32.totalorder %s29, 1
      %p46 = por %p44, %p45
      %p47 = scmp.ne.s32.totalorder %s39, %s42
      %p48 = scmp.eq.s32.totalorder %s29, 0
      %p49 = por %p47, %p48
      %p50 = scmp.ne.s32.totalorder %s39, %s42
      %p51 = scmp.eq.s32.totalorder %s34, 1
      %p52 = por %p50, %p51
      %p53 = scmp.ne.s32.totalorder %s42, %s43
      %p54 = scmp.eq.s32.totalorder %s34, 0
      %p55 = por %p53, %p54
      %p56 = scmp.ne.s32.totalorder %s42, %s43
      %p57 = scmp.eq.s32.totalorder %s35, 1
      %p58 = por %p56, %p57
      %p60 = scmp.ne.s32.totalorder %s43, %s59
      %p61 = scmp.eq.s32.totalorder %s35, 0
      %p62 = por %p60, %p61
      %s63 = ssub.s32 %s29, %s36
      %p64 = scmp.eq.s32.totalorder %s63, 0
      %s66 = sadd.s32 %s65, 1
      %s67 = scalar_select %p64, %s65, %s66
      %p70 = pneg %p64
      %p71 = scmp.eq.s32.totalorder %s29, 1
      %p72 = por %p70, %p71
      %p73 = scmp.ne.s32.totalorder %s65, %s68
      %p74 = scmp.eq.s32.totalorder %s29, 0
      %p75 = por %p73, %p74
      %p76 = scmp.ne.s32.totalorder %s65, %s68
      %p77 = scmp.eq.s32.totalorder %s34, 1
      %p78 = por %p76, %p77
      %p79 = scmp.ne.s32.totalorder %s68, %s69
      %p80 = scmp.eq.s32.totalorder %s34, 0
      %p81 = por %p79, %p80
      %p82 = scmp.ne.s32.totalorder %s68, %s69
      %p83 = scmp.eq.s32.totalorder %s35, 1
      %p84 = por %p82, %p83
      %p86 = scmp.ne.s32.totalorder %s69, %s85
      %p87 = scmp.eq.s32.totalorder %s35, 0
      %p88 = por %p86, %p87
      %s89 = ssub.s32 %s29, %s36
      %p90 = scmp.eq.s32.totalorder %s89, 0
      %s92 = sadd.s32 %s91, 1
      %s93 = scalar_select %p90, %s91, %s92
      %p96 = pneg %p90
      %p97 = scmp.eq.s32.totalorder %s29, 1
      %p98 = por %p96, %p97
      %p99 = scmp.ne.s32.totalorder %s91, %s94
      %p100 = scmp.eq.s32.totalorder %s29, 0
      %p101 = por %p99, %p100
      %p102 = scmp.ne.s32.totalorder %s91, %s94
      %p103 = scmp.eq.s32.totalorder %s34, 1
      %p104 = por %p102, %p103
      %p105 = scmp.ne.s32.totalorder %s94, %s95
      %p106 = scmp.eq.s32.totalorder %s34, 0
      %p107 = por %p105, %p106
      %p108 = scmp.ne.s32.totalorder %s94, %s95
      %p109 = scmp.eq.s32.totalorder %s35, 1
      %p110 = por %p108, %p109
      %p112 = scmp.ne.s32.totalorder %s95, %s111
      %p113 = scmp.eq.s32.totalorder %s35, 0
      %p114 = por %p112, %p113
      %s115 = ssub.s32 %s29, %s36
      %p116 = scmp.eq.s32.totalorder %s115, 0
      %s118 = sadd.s32 %s117, 1
      %s119 = scalar_select %p116, %s117, %s118
      %p122 = pneg %p116
      %p123 = scmp.eq.s32.totalorder %s29, 1
      %p124 = por %p122, %p123
      %p125 = scmp.ne.s32.totalorder %s117, %s120
      %p126 = scmp.eq.s32.totalorder %s29, 0
      %p127 = por %p125, %p126
      %p128 = scmp.ne.s32.totalorder %s117, %s120
      %p129 = scmp.eq.s32.totalorder %s34, 1
      %p130 = por %p128, %p129
      %p131 = scmp.ne.s32.totalorder %s120, %s121
      %p132 = scmp.eq.s32.totalorder %s34, 0
      %p133 = por %p131, %p132
      %p134 = scmp.ne.s32.totalorder %s120, %s121
      %p135 = scmp.eq.s32.totalorder %s35, 1
      %p136 = por %p134, %p135
      %p138 = scmp.ne.s32.totalorder %s121, %s137
      %p139 = scmp.eq.s32.totalorder %s35, 0
      %p140 = por %p138, %p139
      %s142 = sadd.s32 %s141, 1
      %p145 = scmp.eq.s32.totalorder %s29, 1
      %p146 = scmp.ne.s32.totalorder %s141, %s143
      %p147 = scmp.eq.s32.totalorder %s29, 0
      %p148 = por %p146, %p147
      %p149 = scmp.ne.s32.totalorder %s141, %s143
      %p150 = scmp.eq.s32.totalorder %s34, 1
      %p151 = por %p149, %p150
      %p152 = scmp.ne.s32.totalorder %s143, %s144
      %p153 = scmp.eq.s32.totalorder %s34, 0
      %p154 = por %p152, %p153
      %p155 = scmp.ne.s32.totalorder %s143, %s144
      %p156 = scmp.eq.s32.totalorder %s35, 1
      %p157 = por %p155, %p156
      %p159 = scmp.ne.s32.totalorder %s144, %s158
      %p160 = scmp.eq.s32.totalorder %s35, 0
      %p161 = por %p159, %p160
      %s163 = sadd.s32 %s162, 1
      %p166 = scmp.eq.s32.totalorder %s29, 1
      %p167 = scmp.ne.s32.totalorder %s162, %s164
      %p168 = scmp.eq.s32.totalorder %s29, 0
      %p169 = por %p167, %p168
      %p170 = scmp.ne.s32.totalorder %s162, %s164
      %p171 = scmp.eq.s32.totalorder %s34, 1
      %p172 = por %p170, %p171
      %p173 = scmp.ne.s32.totalorder %s164, %s165
      %p174 = scmp.eq.s32.totalorder %s34, 0
      %p175 = por %p173, %p174
      %p176 = scmp.ne.s32.totalorder %s164, %s165
      %p177 = scmp.eq.s32.totalorder %s35, 1
      %p178 = por %p176, %p177
      %p180 = scmp.ne.s32.totalorder %s165, %s179
      %p181 = scmp.eq.s32.totalorder %s35, 0
      %p182 = por %p180, %p181
      %s184 = sadd.s32 %s183, 1
      %p187 = scmp.eq.s32.totalorder %s29, 1
      %p188 = scmp.ne.s32.totalorder %s183, %s185
      %p189 = scmp.eq.s32.totalorder %s29, 0
      %p190 = por %p188, %p189
      %p191 = scmp.ne.s32.totalorder %s183, %s185
      %p192 = scmp.eq.s32.totalorder %s34, 1
      %p193 = por %p191, %p192
      %p194 = scmp.ne.s32.totalorder %s185, %s186
      %p195 = scmp.eq.s32.totalorder %s34, 0
      %p196 = por %p194, %p195
      %p197 = scmp.ne.s32.totalorder %s185, %s186
      %p198 = scmp.eq.s32.totalorder %s35, 1
      %p199 = por %p197, %p198
      %p201 = scmp.ne.s32.totalorder %s186, %s200
      %p202 = scmp.eq.s32.totalorder %s35, 0
      %p203 = por %p201, %p202
      %s205 = sadd.s32 %s204, 1
      %p208 = scmp.eq.s32.totalorder %s29, 1
      %p209 = scmp.ne.s32.totalorder %s204, %s206
      %p210 = scmp.eq.s32.totalorder %s29, 0
      %p211 = por %p209, %p210
      %p212 = scmp.ne.s32.totalorder %s204, %s206
      %p213 = scmp.eq.s32.totalorder %s34, 1
      %p214 = por %p212, %p213
      %p215 = scmp.ne.s32.totalorder %s206, %s207
      %p216 = scmp.eq.s32.totalorder %s34, 0
      %p217 = por %p215, %p216
      %p218 = scmp.ne.s32.totalorder %s206, %s207
      %p219 = scmp.eq.s32.totalorder %s35, 1
      %p220 = por %p218, %p219
      %p222 = scmp.ne.s32.totalorder %s207, %s221
      %p223 = scmp.eq.s32.totalorder %s35, 0
      %p224 = por %p222, %p223
      %s226 = sadd.s32 %s225, 1
      %p229 = scmp.eq.s32.totalorder %s29, 1
      %p230 = scmp.ne.s32.totalorder %s225, %s227
      %p231 = scmp.eq.s32.totalorder %s29, 0
      %p232 = por %p230, %p231
      %p233 = scmp.ne.s32.totalorder %s225, %s227
      %p234 = scmp.eq.s32.totalorder %s34, 1
      %p235 = por %p233, %p234
      %p236 = scmp.ne.s32.totalorder %s227, %s228
      %p237 = scmp.eq.s32.totalorder %s34, 0
      %p238 = por %p236, %p237
      %p239 = scmp.ne.s32.totalorder %s227, %s228
      %p240 = scmp.eq.s32.totalorder %s35, 1
      %p241 = por %p239, %p240
      %p243 = scmp.ne.s32.totalorder %s228, %s242
      %p244 = scmp.eq.s32.totalorder %s35, 0
      %p245 = por %p243, %p244
      %s247 = sadd.s32 %s246, 1
      %p250 = scmp.eq.s32.totalorder %s29, 1
      %p251 = scmp.ne.s32.totalorder %s246, %s248
      %p252 = scmp.eq.s32.totalorder %s29, 0
      %p253 = por %p251, %p252
      %p254 = scmp.ne.s32.totalorder %s246, %s248
      %p255 = scmp.eq.s32.totalorder %s34, 1
      %p256 = por %p254, %p255
      %p257 = scmp.ne.s32.totalorder %s248, %s249
      %p258 = scmp.eq.s32.totalorder %s34, 0
      %p259 = por %p257, %p258
      %p260 = scmp.ne.s32.totalorder %s248, %s249
      %p261 = scmp.eq.s32.totalorder %s35, 1
      %p262 = por %p260, %p261
      %p264 = scmp.ne.s32.totalorder %s249, %s263
      %p265 = scmp.eq.s32.totalorder %s35, 0
      %p266 = por %p264, %p265
      %s268 = sadd.s32 %s267, 1
      %p271 = scmp.eq.s32.totalorder %s29, 1
      %p272 = scmp.ne.s32.totalorder %s267, %s269
      %p273 = scmp.eq.s32.totalorder %s29, 0
      %p274 = por %p272, %p273
      %p275 = scmp.ne.s32.totalorder %s267, %s269
      %p276 = scmp.eq.s32.totalorder %s34, 1
      %p277 = por %p275, %p276
      %p278 = scmp.ne.s32.totalorder %s269, %s270
      %p279 = scmp.eq.s32.totalorder %s34, 0
      %p280 = por %p278, %p279
      %p281 = scmp.ne.s32.totalorder %s269, %s270
      %p282 = scmp.eq.s32.totalorder %s35, 1
      %p283 = por %p281, %p282
      %p285 = scmp.ne.s32.totalorder %s270, %s284
      %p286 = scmp.eq.s32.totalorder %s35, 0
      %p287 = por %p285, %p286
      %s289 = sadd.s32 %s288, 1
      %p292 = scmp.eq.s32.totalorder %s29, 1
      %p293 = scmp.ne.s32.totalorder %s288, %s290
      %p294 = scmp.eq.s32.totalorder %s29, 0
      %p295 = por %p293, %p294
      %p296 = scmp.ne.s32.totalorder %s288, %s290
      %p297 = scmp.eq.s32.totalorder %s34, 1
      %p298 = por %p296, %p297
      %p299 = scmp.ne.s32.totalorder %s290, %s291
      %p300 = scmp.eq.s32.totalorder %s34, 0
      %p301 = por %p299, %p300
      %p302 = scmp.ne.s32.totalorder %s290, %s291
      %p303 = scmp.eq.s32.totalorder %s35, 1
      %p304 = por %p302, %p303
      %p306 = scmp.ne.s32.totalorder %s291, %s305
      %p307 = scmp.eq.s32.totalorder %s35, 0
      %p308 = por %p306, %p307
      %s309 = ssub.s32 %s29, %s36
      %p310 = scmp.eq.s32.totalorder %s309, 0
      %s312 = sadd.s32 %s311, 1
      %s313 = scalar_select %p310, %s311, %s312
      %p316 = pneg %p310
      %p317 = scmp.eq.s32.totalorder %s29, 1
      %p318 = por %p316, %p317
      %p319 = scmp.ne.s32.totalorder %s311, %s314
      %p320 = scmp.eq.s32.totalorder %s29, 0
      %p321 = por %p319, %p320
      %p322 = scmp.ne.s32.totalorder %s311, %s314
      %p323 = scmp.eq.s32.totalorder %s34, 1
      %p324 = por %p322, %p323
      %p325 = scmp.ne.s32.totalorder %s314, %s315
      %p326 = scmp.eq.s32.totalorder %s34, 0
      %p327 = por %p325, %p326
      %p328 = scmp.ne.s32.totalorder %s314, %s315
      %p329 = scmp.eq.s32.totalorder %s35, 1
      %p330 = por %p328, %p329
      %p332 = scmp.ne.s32.totalorder %s315, %s331
      %p333 = scmp.eq.s32.totalorder %s35, 0
      %p334 = por %p332, %p333
      %p335 = scmp.le.s32.totalorder 1, %s29
      %p336 = scmp.lt.s32.totalorder %s29, 3
      %p337 = pnand %p335, %p336
      %p338 = pneg %p337
      // Predicated region
      $region9: #{tpu_custom_call.1} parent=5 // pred_check
        _
      $region10: #{tpu_custom_call.1} parent=5 // pred_check_branch
        %340 = sbr.rel (%p337) target = $region12
      $region11: #{tpu_custom_call.1} parent=5 // pred_region
        %s341 = ssub.s32 %s29, 1
        // Predicated region
        $region13: #{tpu_custom_call.1} parent=11 // pred_check
          %p342 = pneg %p154
        $region14: #{tpu_custom_call.1} parent=11 // pred_check_branch
          %344 = sbr.rel (%p342) target = $region16
        $region15: #{tpu_custom_call.1} parent=11 // pred_region
          %s346 = ssub.s32 512, 512
          %347 = vsyncadd [#allocation9], %s346
          %s348 = sshll.u32 [#allocation8], 4
          %s349 = int_to_ptr.vmem [resolvable:$true] %s348
          %354 = dma.hbm_to_vmem [thread:$0]  %s4, 512, %s349, [#allocation9], 128, 128, 8
        $region16: #{tpu_custom_call.1} parent=11 // pred_fallthru
          _
        // Predicated region
        $region17: #{tpu_custom_call.1} parent=11 // pred_check
          %p355 = pneg %p175
        $region18: #{tpu_custom_call.1} parent=11 // pred_check_branch
          %357 = sbr.rel (%p355) target = $region20
        $region19: #{tpu_custom_call.1} parent=11 // pred_region
          _
        $region20: #{tpu_custom_call.1} parent=11 // pred_fallthru
          _
        // Predicated region
        $region21: #{tpu_custom_call.1} parent=11 // pred_check
          %p358 = pneg %p196
        $region22: #{tpu_custom_call.1} parent=11 // pred_check_branch
          %360 = sbr.rel (%p358) target = $region24
        $region23: #{tpu_custom_call.1} parent=11 // pred_region
          %s362 = ssub.s32 512, 512
          %363 = vsyncadd [#allocation9], %s362
          %s364 = sshll.u32 [#allocation10], 4
          %s365 = int_to_ptr.vmem [resolvable:$true] %s364
          %370 = dma.hbm_to_vmem [thread:$0]  %s6, 512, %s365, [#allocation9], 128, 128, 8
        $region24: #{tpu_custom_call.1} parent=11 // pred_fallthru
          _
        // Predicated region
        $region25: #{tpu_custom_call.1} parent=11 // pred_check
          %p371 = pneg %p217
        $region26: #{tpu_custom_call.1} parent=11 // pred_check_branch
          %373 = sbr.rel (%p371) target = $region28
        $region27: #{tpu_custom_call.1} parent=11 // pred_region
          _
        $region28: #{tpu_custom_call.1} parent=11 // pred_fallthru
          _
        // Predicated region
        $region29: #{tpu_custom_call.1} parent=11 // pred_check
          %p374 = pneg %p238
        $region30: #{tpu_custom_call.1} parent=11 // pred_check_branch
          %376 = sbr.rel (%p374) target = $region32
        $region31: #{tpu_custom_call.1} parent=11 // pred_region
          %s378 = ssub.s32 512, 512
          %379 = vsyncadd [#allocation12], %s378
          %s380 = sshll.u32 [#allocation11], 4
          %s381 = int_to_ptr.vmem [resolvable:$true] %s380
          %386 = dma.hbm_to_vmem [thread:$0]  %s8, 512, %s381, [#allocation12], 128, 128, 8
        $region32: #{tpu_custom_call.1} parent=11 // pred_fallthru
          _
        // Predicated region
        $region33: #{tpu_custom_call.1} parent=11 // pred_check
          %p387 = pneg %p259
        $region34: #{tpu_custom_call.1} parent=11 // pred_check_branch
          %389 = sbr.rel (%p387) target = $region36
        $region35: #{tpu_custom_call.1} parent=11 // pred_region
          _
        $region36: #{tpu_custom_call.1} parent=11 // pred_fallthru
          _
        // Predicated region
        $region37: #{tpu_custom_call.1} parent=11 // pred_check
          %p390 = pneg %p280
        $region38: #{tpu_custom_call.1} parent=11 // pred_check_branch
          %392 = sbr.rel (%p390) target = $region40
        $region39: #{tpu_custom_call.1} parent=11 // pred_region
          %s394 = ssub.s32 512, 512
          %395 = vsyncadd [#allocation12], %s394
          %s396 = sshll.u32 [#allocation13], 4
          %s397 = int_to_ptr.vmem [resolvable:$true] %s396
          %402 = dma.hbm_to_vmem [thread:$0]  %s10, 512, %s397, [#allocation12], 128, 128, 8
        $region40: #{tpu_custom_call.1} parent=11 // pred_fallthru
          _
        // Predicated region
        $region41: #{tpu_custom_call.1} parent=11 // pred_check
          %p403 = pneg %p301
        $region42: #{tpu_custom_call.1} parent=11 // pred_check_branch
          %405 = sbr.rel (%p403) target = $region44
        $region43: #{tpu_custom_call.1} parent=11 // pred_region
          _
        $region44: #{tpu_custom_call.1} parent=11 // pred_fallthru
          _
      $region12: #{tpu_custom_call.1} parent=5 // pred_fallthru
        _
      %p406 = scmp.lt.s32.totalorder %s29, 2
      // Predicated region
      $region45: #{tpu_custom_call.1} parent=5 // pred_check
        %p407 = pneg %p406
      $region46: #{tpu_custom_call.1} parent=5 // pred_check_branch
        %409 = sbr.rel (%p407) target = $region48
      $region47: #{tpu_custom_call.1} parent=5 // pred_region
        // Predicated region
        $region49: #{tpu_custom_call.1} parent=47 // pred_check
          %p410 = pneg %p49
        $region50: #{tpu_custom_call.1} parent=47 // pred_check_branch
          %412 = sbr.rel (%p410) target = $region52
        $region51: #{tpu_custom_call.1} parent=47 // pred_region
          %s413 = sand.u32 %s39, 1
          %s414 = scalar_lea.sflag [#allocation3], %s413
          %s415 = sand.u32 %s39, 1
          %s416 = smul.addr %s415, 8
          %s417 = scalar_lea.vmem [#allocation2], %s416
          %s419 = ssub.s32 128, 128
          %420 = vsyncadd %s414, %s419
          %s421 = smul.addr %s29, 128
          %s422 = scalar_lea.hbm %s0, %s421
          %s424 = sshll.u32 %s417, 4
          %s425 = int_to_ptr.vmem [resolvable:$true] %s424
          %427 = dma.hbm_to_vmem [thread:$0]  %s422, 128, %s425, %s414
        $region52: #{tpu_custom_call.1} parent=47 // pred_fallthru
          _
        // Predicated region
        $region53: #{tpu_custom_call.1} parent=47 // pred_check
          %p428 = pneg %p75
        $region54: #{tpu_custom_call.1} parent=47 // pred_check_branch
          %430 = sbr.rel (%p428) target = $region56
        $region55: #{tpu_custom_call.1} parent=47 // pred_region
          %s431 = sand.u32 %s29, 1
          %s432 = scalar_lea.sflag [#allocation6], %s431
          %s433 = sand.u32 %s65, 1
          %s434 = smul.addr %s433, 8
          %s435 = scalar_lea.vmem [#allocation5], %s434
          %s437 = ssub.s32 128, 128
          %438 = vsyncadd %s432, %s437
          %s439 = smul.addr %s29, 128
          %s440 = scalar_lea.hbm %s1, %s439
          %s442 = sshll.u32 %s435, 4
          %s443 = int_to_ptr.vmem [resolvable:$true] %s442
          %445 = dma.hbm_to_vmem [thread:$0]  %s440, 128, %s443, %s432
        $region56: #{tpu_custom_call.1} parent=47 // pred_fallthru
          _
        // Predicated region
        $region57: #{tpu_custom_call.1} parent=47 // pred_check
          %p446 = pneg %p101
        $region58: #{tpu_custom_call.1} parent=47 // pred_check_branch
          %448 = sbr.rel (%p446) target = $region60
        $region59: #{tpu_custom_call.1} parent=47 // pred_region
          %s449 = sand.u32 %s29, 1
          %s450 = scalar_lea.sflag [#allocation6], %s449
          %s451 = sand.u32 %s91, 1
          %s452 = smul.addr %s451, 8
          %s453 = scalar_lea.vmem [#allocation7], %s452
          %s455 = ssub.s32 128, 128
          %456 = vsyncadd %s450, %s455
          %s457 = smul.addr %s29, 128
          %s458 = scalar_lea.hbm %s2, %s457
          %s460 = sshll.u32 %s453, 4
          %s461 = int_to_ptr.vmem [resolvable:$true] %s460
          %463 = dma.hbm_to_vmem [thread:$0]  %s458, 128, %s461, %s450
        $region60: #{tpu_custom_call.1} parent=47 // pred_fallthru
          _
        // Predicated region
        $region61: #{tpu_custom_call.1} parent=47 // pred_check
          %p464 = pneg %p127
        $region62: #{tpu_custom_call.1} parent=47 // pred_check_branch
          %466 = sbr.rel (%p464) target = $region64
        $region63: #{tpu_custom_call.1} parent=47 // pred_region
          %p467 = scmp.lt.s32.totalorder %s29, 1
          %s468 = scalar_select %p467, %s29, 1
          %s469 = scalar_lea.vmem %s3, %s468
        $region64: #{tpu_custom_call.1} parent=47 // pred_fallthru
          _
      $region48: #{tpu_custom_call.1} parent=5 // pred_fallthru
        _
      %p470 = scmp.le.s32.totalorder 1, %s29
      %p471 = scmp.lt.s32.totalorder %s29, 3
      %p472 = pnand %p470, %p471
      %p473 = pneg %p472
      // Predicated region
      $region65: #{tpu_custom_call.1} parent=5 // pred_check
        _
      $region66: #{tpu_custom_call.1} parent=5 // pred_check_branch
        %475 = sbr.rel (%p472) target = $region68
      $region67: #{tpu_custom_call.1} parent=5 // pred_region
        %s476 = ssub.s32 %s29, 1
        %s477 = sand.u32 %s42, 1
        %s478 = scalar_lea.sflag [#allocation3], %s477
        %s479 = sand.u32 %s42, 1
        %s480 = smul.addr %s479, 8
        %s481 = scalar_lea.vmem [#allocation2], %s480
        // Predicated region
        $region69: #{tpu_custom_call.1} parent=67 // pred_check
          %p482 = pneg %p55
        $region70: #{tpu_custom_call.1} parent=67 // pred_check_branch
          %484 = sbr.rel (%p482) target = $region72
        $region71: #{tpu_custom_call.1} parent=67 // pred_region
          %485 = dma.done %s478, 128
        $region72: #{tpu_custom_call.1} parent=67 // pred_fallthru
          _
        %s486 = sand.u32 %s34, 1
        %s487 = scalar_lea.sflag [#allocation6], %s486
        %s488 = sand.u32 %s68, 1
        %s489 = smul.addr %s488, 8
        %s490 = scalar_lea.vmem [#allocation5], %s489
        // Predicated region
        $region73: #{tpu_custom_call.1} parent=67 // pred_check
          %p491 = pneg %p81
        $region74: #{tpu_custom_call.1} parent=67 // pred_check_branch
          %493 = sbr.rel (%p491) target = $region76
        $region75: #{tpu_custom_call.1} parent=67 // pred_region
          %494 = dma.done %s487, 128
        $region76: #{tpu_custom_call.1} parent=67 // pred_fallthru
          _
        %s495 = sand.u32 %s34, 1
        %s496 = scalar_lea.sflag [#allocation6], %s495
        %s497 = sand.u32 %s94, 1
        %s498 = smul.addr %s497, 8
        %s499 = scalar_lea.vmem [#allocation7], %s498
        // Predicated region
        $region77: #{tpu_custom_call.1} parent=67 // pred_check
          %p500 = pneg %p107
        $region78: #{tpu_custom_call.1} parent=67 // pred_check_branch
          %502 = sbr.rel (%p500) target = $region80
        $region79: #{tpu_custom_call.1} parent=67 // pred_region
          %503 = dma.done %s496, 128
        $region80: #{tpu_custom_call.1} parent=67 // pred_fallthru
          _
        // Predicated region
        $region81: #{tpu_custom_call.1} parent=67 // pred_check
          %p504 = pneg %p154
        $region82: #{tpu_custom_call.1} parent=67 // pred_check_branch
          %506 = sbr.rel (%p504) target = $region84
        $region83: #{tpu_custom_call.1} parent=67 // pred_region
          %507 = dma.done [#allocation9], 512
        $region84: #{tpu_custom_call.1} parent=67 // pred_fallthru
          _
        // Predicated region
        $region85: #{tpu_custom_call.1} parent=67 // pred_check
          %p508 = pneg %p196
        $region86: #{tpu_custom_call.1} parent=67 // pred_check_branch
          %510 = sbr.rel (%p508) target = $region88
        $region87: #{tpu_custom_call.1} parent=67 // pred_region
          %511 = dma.done [#allocation9], 512
        $region88: #{tpu_custom_call.1} parent=67 // pred_fallthru
          _
        // Predicated region
        $region89: #{tpu_custom_call.1} parent=67 // pred_check
          %p512 = pneg %p238
        $region90: #{tpu_custom_call.1} parent=67 // pred_check_branch
          %514 = sbr.rel (%p512) target = $region92
        $region91: #{tpu_custom_call.1} parent=67 // pred_region
          %515 = dma.done [#allocation12], 512
        $region92: #{tpu_custom_call.1} parent=67 // pred_fallthru
          _
        // Predicated region
        $region93: #{tpu_custom_call.1} parent=67 // pred_check
          %p516 = pneg %p280
        $region94: #{tpu_custom_call.1} parent=67 // pred_check_branch
          %518 = sbr.rel (%p516) target = $region96
        $region95: #{tpu_custom_call.1} parent=67 // pred_region
          %519 = dma.done [#allocation12], 512
        $region96: #{tpu_custom_call.1} parent=67 // pred_fallthru
          _
        %s520 = sand.u32 %s42, 1
        %s521 = scalar_lea.sflag [#allocation3], %s520
        %s522 = sand.u32 %s42, 1
        %s523 = smul.addr %s522, 8
        %s524 = scalar_lea.vmem [#allocation2], %s523
        %p525 = pneg %p55
        %p526 = pneg %p52
        %s527 = sand.u32 %s34, 1
        %s528 = scalar_lea.sflag [#allocation6], %s527
        %s529 = sand.u32 %s68, 1
        %s530 = smul.addr %s529, 8
        %s531 = scalar_lea.vmem [#allocation5], %s530
        %p532 = pneg %p81
        %p533 = pneg %p78
        %s534 = sand.u32 %s34, 1
        %s535 = scalar_lea.sflag [#allocation6], %s534
        %s536 = sand.u32 %s94, 1
        %s537 = smul.addr %s536, 8
        %s538 = scalar_lea.vmem [#allocation7], %s537
        %p539 = pneg %p107
        %p540 = pneg %p104
        %p541 = scmp.lt.s32.totalorder %s34, 1
        %s542 = scalar_select %p541, %s34, 1
        %s543 = scalar_lea.vmem %s3, %s542
        %p544 = pneg %p133
        %p545 = pneg %p130
        %p546 = pneg %p154
        %p547 = pneg %p151
        %p548 = pneg %p175
        %p549 = pneg %p172
        %p550 = pneg %p196
        %p551 = pneg %p193
        %p552 = pneg %p217
        %p553 = pneg %p214
        %p554 = pneg %p238
        %p555 = pneg %p235
        %p556 = pneg %p259
        %p557 = pneg %p256
        %p558 = pneg %p280
        %p559 = pneg %p277
        %p560 = pneg %p301
        %p561 = pneg %p298
        %p562 = pneg %p327
        %p563 = pneg %p324
        %s564 = sand.u32 %s314, 1
        %s565 = scalar_lea.sflag [#allocation4], %s564
        %s566 = sand.u32 %s314, 1
        %s567 = smul.addr %s566, 8
        %s568 = scalar_lea.vmem [#allocation14], %s567
        %p569 = scmp.lt.s32.totalorder %s34, 1
        %s570 = scalar_select %p569, %s34, 1
        %s571 = scalar_lea.vmem %s3, %s570
        %v572 = vld [vmem:[%s481] sm:$0xff]
        %v573 = vld [vmem:[%s490] sm:$0xff]
        %v574 = vld [vmem:[%s499] sm:$0xff]
        %v575 = vld [vmem:[#allocation8] sm:$0xff]
        %v576 = vld [vmem:[#allocation8 + $0x8] sm:$0xff]
        %v577 = vld [vmem:[#allocation8 + $0x10] sm:$0xff]
        %v578 = vld [vmem:[#allocation8 + $0x18] sm:$0xff]
        %v579 = vld [vmem:[%s5] sm:$0x1]
        %v581 = vlaneseq
        %v582 = vshrl.u32 %v581, 7
        %v583 = vsub.s32 0, %v582
        %v584 = vrot.slane %v579, %v583
        %vm586 = vcmask 261120
        %v588 = vsel %vm586, %v572, 0
        %590 = vmatprep.subr.mxu0 0.0
        %591 = vmatpush1.msra.mxu0 0.0
        %592 = vmatprep.subr.mxu0 0.0
        %593 = vmatpush1.msra.mxu0 0.0
        %594 = vmatprep.subr.mxu0 0.0
        %595 = vmatpush1.msra.mxu0 0.0
        %596 = vmatprep.subr.mxu0 0.0
        %597 = vmatpush1.msra.mxu0 0.0
        %598 = vmatprep.subr.mxu0 0.0
        %599 = vmatpush1.msra.mxu0 0.0
        %600 = vmatprep.subr.mxu0 0.0
        %601 = vmatpush1.msra.mxu0 0.0
        %602 = vmatprep.subr.mxu0 0.0
        %603 = vmatpush1.msra.mxu0 0.0
        %604 = vmatprep.subr.mxu0 0.0
        %605 = vmatpush1.msra.mxu0 0.0
        %606 = vmatprep.subr.mxu0 0.0
        %607 = vmatpush1.msra.mxu0 0.0
        %608 = vmatprep.subr.mxu0 0.0
        %609 = vmatpush1.msra.mxu0 0.0
        %610 = vmatprep.subr.mxu0 0.0
        %611 = vmatpush1.msra.mxu0 0.0
        %612 = vmatprep.subr.mxu0 0.0
        %613 = vmatpush1.msra.mxu0 0.0
        %614 = vmatprep.subr.mxu0 0.0
        %615 = vmatpush1.msra.mxu0 %v578
        %616 = vmatprep.subr.mxu0 0.0
        %617 = vmatpush1.msra.mxu0 %v577
        %618 = vmatprep.subr.mxu0 0.0
        %619 = vmatpush1.msra.mxu0 %v576
        %620 = vmatprep.subr.mxu0 0.0
        %621 = vmatpush1.msra.mxu0 %v575
        %622 = vmatprep.subr.mxu0 0.0
        %623 = vmatpush2.msra.mxu0 0.0
        %624 = vmatprep.subr.mxu0 0.0
        %625 = vmatpush2.msra.mxu0 0.0
        %626 = vmatprep.subr.mxu0 0.0
        %627 = vmatpush2.msra.mxu0 0.0
        %628 = vmatprep.subr.mxu0 0.0
        %629 = vmatpush2.msra.mxu0 0.0
        %630 = vmatprep.subr.mxu0 0.0
        %631 = vmatpush2.msra.mxu0 0.0
        %632 = vmatprep.subr.mxu0 0.0
        %633 = vmatpush2.msra.mxu0 0.0
        %634 = vmatprep.subr.mxu0 0.0
        %635 = vmatpush2.msra.mxu0 0.0
        %636 = vmatprep.subr.mxu0 0.0
        %637 = vmatpush2.msra.mxu0 0.0
        %638 = vmatprep.subr.mxu0 0.0
        %639 = vmatpush2.msra.mxu0 0.0
        %640 = vmatprep.subr.mxu0 0.0
        %641 = vmatpush2.msra.mxu0 0.0
        %642 = vmatprep.subr.mxu0 0.0
        %643 = vmatpush2.msra.mxu0 0.0
        %644 = vmatprep.subr.mxu0 0.0
        %645 = vmatpush2.msra.mxu0 0.0
        %646 = vmatprep.subr.mxu0 0.0
        %647 = vmatpush2.msra.mxu0 0.0
        %648 = vmatprep.subr.mxu0 0.0
        %649 = vmatpush2.msra.mxu0 0.0
        %650 = vmatprep.subr.mxu0 0.0
        %651 = vmatpush2.msra.mxu0 0.0
        %652 = vmatprep.subr.mxu0 0.0
        %653 = vmatpush2.msra.mxu0 0.0
        %654 = vmatprep.mubr.f32.mxu0 0.0
        %655 = vmatmul.mubr.f32.gmra.mxu0 %v588
        %v656 = vpop.f32.mrf.mxu0
        %v657 = vadd.f32 %v584, %v656
        %v658 = vpop.f32.mrf.mxu0
        %659 = vdwg.mxu0
        %v660 = vld [vmem:[#allocation10] sm:$0xff]
        %v661 = vld [vmem:[#allocation10 + $0x8] sm:$0xff]
        %v662 = vld [vmem:[#allocation10 + $0x10] sm:$0xff]
        %v663 = vld [vmem:[#allocation10 + $0x18] sm:$0xff]
        %v664 = vld [vmem:[%s7] sm:$0x1]
        %v666 = vlaneseq
        %v667 = vshrl.u32 %v666, 7
        %v668 = vsub.s32 0, %v667
        %v669 = vrot.slane %v664, %v668
        %v672 = vsel %vm586, %v573, 0
        %674 = vmatprep.subr.mxu0 0.0
        %675 = vmatpush1.msra.mxu0 0.0
        %676 = vmatprep.subr.mxu0 0.0
        %677 = vmatpush1.msra.mxu0 0.0
        %678 = vmatprep.subr.mxu0 0.0
        %679 = vmatpush1.msra.mxu0 0.0
        %680 = vmatprep.subr.mxu0 0.0
        %681 = vmatpush1.msra.mxu0 0.0
        %682 = vmatprep.subr.mxu0 0.0
        %683 = vmatpush1.msra.mxu0 0.0
        %684 = vmatprep.subr.mxu0 0.0
        %685 = vmatpush1.msra.mxu0 0.0
        %686 = vmatprep.subr.mxu0 0.0
        %687 = vmatpush1.msra.mxu0 0.0
        %688 = vmatprep.subr.mxu0 0.0
        %689 = vmatpush1.msra.mxu0 0.0
        %690 = vmatprep.subr.mxu0 0.0
        %691 = vmatpush1.msra.mxu0 0.0
        %692 = vmatprep.subr.mxu0 0.0
        %693 = vmatpush1.msra.mxu0 0.0
        %694 = vmatprep.subr.mxu0 0.0
        %695 = vmatpush1.msra.mxu0 0.0
        %696 = vmatprep.subr.mxu0 0.0
        %697 = vmatpush1.msra.mxu0 0.0
        %698 = vmatprep.subr.mxu0 0.0
        %699 = vmatpush1.msra.mxu0 %v663
        %700 = vmatprep.subr.mxu0 0.0
        %701 = vmatpush1.msra.mxu0 %v662
        %702 = vmatprep.subr.mxu0 0.0
        %703 = vmatpush1.msra.mxu0 %v661
        %704 = vmatprep.subr.mxu0 0.0
        %705 = vmatpush1.msra.mxu0 %v660
        %706 = vmatprep.subr.mxu0 0.0
        %707 = vmatpush2.msra.mxu0 0.0
        %708 = vmatprep.subr.mxu0 0.0
        %709 = vmatpush2.msra.mxu0 0.0
        %710 = vmatprep.subr.mxu0 0.0
        %711 = vmatpush2.msra.mxu0 0.0
        %712 = vmatprep.subr.mxu0 0.0
        %713 = vmatpush2.msra.mxu0 0.0
        %714 = vmatprep.subr.mxu0 0.0
        %715 = vmatpush2.msra.mxu0 0.0
        %716 = vmatprep.subr.mxu0 0.0
        %717 = vmatpush2.msra.mxu0 0.0
        %718 = vmatprep.subr.mxu0 0.0
        %719 = vmatpush2.msra.mxu0 0.0
        %720 = vmatprep.subr.mxu0 0.0
        %721 = vmatpush2.msra.mxu0 0.0
        %722 = vmatprep.subr.mxu0 0.0
        %723 = vmatpush2.msra.mxu0 0.0
        %724 = vmatprep.subr.mxu0 0.0
        %725 = vmatpush2.msra.mxu0 0.0
        %726 = vmatprep.subr.mxu0 0.0
        %727 = vmatpush2.msra.mxu0 0.0
        %728 = vmatprep.subr.mxu0 0.0
        %729 = vmatpush2.msra.mxu0 0.0
        %730 = vmatprep.subr.mxu0 0.0
        %731 = vmatpush2.msra.mxu0 0.0
        %732 = vmatprep.subr.mxu0 0.0
        %733 = vmatpush2.msra.mxu0 0.0
        %734 = vmatprep.subr.mxu0 0.0
        %735 = vmatpush2.msra.mxu0 0.0
        %736 = vmatprep.subr.mxu0 0.0
        %737 = vmatpush2.msra.mxu0 0.0
        %738 = vmatprep.mubr.f32.mxu0 0.0
        %739 = vmatmul.mubr.f32.gmra.mxu0 %v672
        %v740 = vpop.f32.mrf.mxu0
        %v741 = vadd.f32 %v669, %v740
        %v742 = vpop.f32.mrf.mxu0
        %743 = vdwg.mxu0
        %v744 = vld [vmem:[#allocation11] sm:$0xff]
        %v745 = vld [vmem:[#allocation11 + $0x8] sm:$0xff]
        %v746 = vld [vmem:[#allocation11 + $0x10] sm:$0xff]
        %v747 = vld [vmem:[#allocation11 + $0x18] sm:$0xff]
        %v748 = vld [vmem:[%s9] sm:$0x1]
        %v750 = vlaneseq
        %v751 = vshrl.u32 %v750, 7
        %v752 = vsub.s32 0, %v751
        %v753 = vrot.slane %v748, %v752
        %v756 = vsel %vm586, %v574, 0
        %758 = vmatprep.subr.mxu0 0.0
        %759 = vmatpush1.msra.mxu0 0.0
        %760 = vmatprep.subr.mxu0 0.0
        %761 = vmatpush1.msra.mxu0 0.0
        %762 = vmatprep.subr.mxu0 0.0
        %763 = vmatpush1.msra.mxu0 0.0
        %764 = vmatprep.subr.mxu0 0.0
        %765 = vmatpush1.msra.mxu0 0.0
        %766 = vmatprep.subr.mxu0 0.0
        %767 = vmatpush1.msra.mxu0 0.0
        %768 = vmatprep.subr.mxu0 0.0
        %769 = vmatpush1.msra.mxu0 0.0
        %770 = vmatprep.subr.mxu0 0.0
        %771 = vmatpush1.msra.mxu0 0.0
        %772 = vmatprep.subr.mxu0 0.0
        %773 = vmatpush1.msra.mxu0 0.0
        %774 = vmatprep.subr.mxu0 0.0
        %775 = vmatpush1.msra.mxu0 0.0
        %776 = vmatprep.subr.mxu0 0.0
        %777 = vmatpush1.msra.mxu0 0.0
        %778 = vmatprep.subr.mxu0 0.0
        %779 = vmatpush1.msra.mxu0 0.0
        %780 = vmatprep.subr.mxu0 0.0
        %781 = vmatpush1.msra.mxu0 0.0
        %782 = vmatprep.subr.mxu0 0.0
        %783 = vmatpush1.msra.mxu0 %v747
        %784 = vmatprep.subr.mxu0 0.0
        %785 = vmatpush1.msra.mxu0 %v746
        %786 = vmatprep.subr.mxu0 0.0
        %787 = vmatpush1.msra.mxu0 %v745
        %788 = vmatprep.subr.mxu0 0.0
        %789 = vmatpush1.msra.mxu0 %v744
        %790 = vmatprep.subr.mxu0 0.0
        %791 = vmatpush2.msra.mxu0 0.0
        %792 = vmatprep.subr.mxu0 0.0
        %793 = vmatpush2.msra.mxu0 0.0
        %794 = vmatprep.subr.mxu0 0.0
        %795 = vmatpush2.msra.mxu0 0.0
        %796 = vmatprep.subr.mxu0 0.0
        %797 = vmatpush2.msra.mxu0 0.0
        %798 = vmatprep.subr.mxu0 0.0
        %799 = vmatpush2.msra.mxu0 0.0
        %800 = vmatprep.subr.mxu0 0.0
        %801 = vmatpush2.msra.mxu0 0.0
        %802 = vmatprep.subr.mxu0 0.0
        %803 = vmatpush2.msra.mxu0 0.0
        %804 = vmatprep.subr.mxu0 0.0
        %805 = vmatpush2.msra.mxu0 0.0
        %806 = vmatprep.subr.mxu0 0.0
        %807 = vmatpush2.msra.mxu0 0.0
        %808 = vmatprep.subr.mxu0 0.0
        %809 = vmatpush2.msra.mxu0 0.0
        %810 = vmatprep.subr.mxu0 0.0
        %811 = vmatpush2.msra.mxu0 0.0
        %812 = vmatprep.subr.mxu0 0.0
        %813 = vmatpush2.msra.mxu0 0.0
        %814 = vmatprep.subr.mxu0 0.0
        %815 = vmatpush2.msra.mxu0 0.0
        %816 = vmatprep.subr.mxu0 0.0
        %817 = vmatpush2.msra.mxu0 0.0
        %818 = vmatprep.subr.mxu0 0.0
        %819 = vmatpush2.msra.mxu0 0.0
        %820 = vmatprep.subr.mxu0 0.0
        %821 = vmatpush2.msra.mxu0 0.0
        %822 = vmatprep.mubr.f32.mxu0 0.0
        %823 = vmatmul.mubr.f32.gmra.mxu0 %v756
        %v824 = vpop.f32.mrf.mxu0
        %v825 = vadd.f32 %v753, %v824
        %v826 = vpop.f32.mrf.mxu0
        %827 = vdwg.mxu0
        %v828 = vmul.f32 %v657, 0.35355338
        %v829 = vld [vmem:[%s571] sm:$0x1]
        %v831 = vlaneseq
        %v832 = vshrl.u32 %v831, 7
        %v833 = vsub.s32 0, %v832
        %v834 = vrot.slane %v829, %v833
        %vm836 = vcmask 64512
        %v838 = vsel %vm836, %v828, 0
        %v841 = vsel %vm836, %v741, 0
        %843 = vmatprep.subr.mxu0 0.0
        %844 = vmatpush1.xpose.msra.mxu0 0.0
        %845 = vmatprep.subr.mxu0 0.0
        %846 = vmatpush1.xpose.msra.mxu0 0.0
        %847 = vmatprep.subr.mxu0 0.0
        %848 = vmatpush1.xpose.msra.mxu0 0.0
        %849 = vmatprep.subr.mxu0 0.0
        %850 = vmatpush1.xpose.msra.mxu0 0.0
        %851 = vmatprep.subr.mxu0 0.0
        %852 = vmatpush1.xpose.msra.mxu0 0.0
        %853 = vmatprep.subr.mxu0 0.0
        %854 = vmatpush1.xpose.msra.mxu0 0.0
        %855 = vmatprep.subr.mxu0 0.0
        %856 = vmatpush1.xpose.msra.mxu0 0.0
        %857 = vmatprep.subr.mxu0 0.0
        %858 = vmatpush1.xpose.msra.mxu0 0.0
        %859 = vmatprep.subr.mxu0 0.0
        %860 = vmatpush1.xpose.msra.mxu0 0.0
        %861 = vmatprep.subr.mxu0 0.0
        %862 = vmatpush1.xpose.msra.mxu0 0.0
        %863 = vmatprep.subr.mxu0 0.0
        %864 = vmatpush1.xpose.msra.mxu0 0.0
        %865 = vmatprep.subr.mxu0 0.0
        %866 = vmatpush1.xpose.msra.mxu0 0.0
        %867 = vmatprep.subr.mxu0 0.0
        %868 = vmatpush1.xpose.msra.mxu0 0.0
        %869 = vmatprep.subr.mxu0 0.0
        %870 = vmatpush1.xpose.msra.mxu0 0.0
        %871 = vmatprep.subr.mxu0 0.0
        %872 = vmatpush1.xpose.msra.mxu0 0.0
        %873 = vmatprep.subr.mxu0 0.0
        %874 = vmatpush1.xpose.msra.mxu0 %v841
        %875 = vmatprep.subr.mxu0 0.0
        %876 = vmatpush2.xpose.msra.mxu0 0.0
        %877 = vmatprep.subr.mxu0 0.0
        %878 = vmatpush2.xpose.msra.mxu0 0.0
        %879 = vmatprep.subr.mxu0 0.0
        %880 = vmatpush2.xpose.msra.mxu0 0.0
        %881 = vmatprep.subr.mxu0 0.0
        %882 = vmatpush2.xpose.msra.mxu0 0.0
        %883 = vmatprep.subr.mxu0 0.0
        %884 = vmatpush2.xpose.msra.mxu0 0.0
        %885 = vmatprep.subr.mxu0 0.0
        %886 = vmatpush2.xpose.msra.mxu0 0.0
        %887 = vmatprep.subr.mxu0 0.0
        %888 = vmatpush2.xpose.msra.mxu0 0.0
        %889 = vmatprep.subr.mxu0 0.0
        %890 = vmatpush2.xpose.msra.mxu0 0.0
        %891 = vmatprep.subr.mxu0 0.0
        %892 = vmatpush2.xpose.msra.mxu0 0.0
        %893 = vmatprep.subr.mxu0 0.0
        %894 = vmatpush2.xpose.msra.mxu0 0.0
        %895 = vmatprep.subr.mxu0 0.0
        %896 = vmatpush2.xpose.msra.mxu0 0.0
        %897 = vmatprep.subr.mxu0 0.0
        %898 = vmatpush2.xpose.msra.mxu0 0.0
        %899 = vmatprep.subr.mxu0 0.0
        %900 = vmatpush2.xpose.msra.mxu0 0.0
        %901 = vmatprep.subr.mxu0 0.0
        %902 = vmatpush2.xpose.msra.mxu0 0.0
        %903 = vmatprep.subr.mxu0 0.0
        %904 = vmatpush2.xpose.msra.mxu0 0.0
        %905 = vmatprep.subr.mxu0 0.0
        %906 = vmatpush2.xpose.msra.mxu0 0.0
        %907 = vmatprep.mubr.f32.mxu0 0.0
        %908 = vmatmul.mubr.f32.gmra.mxu0 %v838
        %v909 = vpop.f32.mrf.mxu0
        %v910 = vadd.f32 %v834, %v909
        %v911 = vpop.f32.mrf.mxu0
        %912 = vdwg.mxu0
        %v913 = vsel %vm836, %v910, -inf
        %914 = vmax.xlane.f32.xlu0 %v913
        %v915 = vpop.xlane.xlu0 %914
        %v916 = vsub.f32 %v910, %v915
        %v917 = vmul.f32 %v916, 1.442695
        %v918 = vpow.pop %v917
        %v919 = vsel %vm836, %v918, 0.0
        %920 = vadd.xlane.f32.xlu0 %v919
        %v921 = vpop.xlane.xlu0 %920
        %v922 = vrcp.pop %v921
        %v923 = vmul.f32 %v918, %v922
        %v925 = vsel %vm836, %v923, 0
        %927 = vmatprep.subr.mxu0 0.0
        %928 = vmatpush1.msra.mxu0 0.0
        %929 = vmatprep.subr.mxu0 0.0
        %930 = vmatpush1.msra.mxu0 0.0
        %931 = vmatprep.subr.mxu0 0.0
        %932 = vmatpush1.msra.mxu0 0.0
        %933 = vmatprep.subr.mxu0 0.0
        %934 = vmatpush1.msra.mxu0 0.0
        %935 = vmatprep.subr.mxu0 0.0
        %936 = vmatpush1.msra.mxu0 0.0
        %937 = vmatprep.subr.mxu0 0.0
        %938 = vmatpush1.msra.mxu0 0.0
        %939 = vmatprep.subr.mxu0 0.0
        %940 = vmatpush1.msra.mxu0 0.0
        %941 = vmatprep.subr.mxu0 0.0
        %942 = vmatpush1.msra.mxu0 0.0
        %943 = vmatprep.subr.mxu0 0.0
        %944 = vmatpush1.msra.mxu0 0.0
        %945 = vmatprep.subr.mxu0 0.0
        %946 = vmatpush1.msra.mxu0 0.0
        %947 = vmatprep.subr.mxu0 0.0
        %948 = vmatpush1.msra.mxu0 0.0
        %949 = vmatprep.subr.mxu0 0.0
        %950 = vmatpush1.msra.mxu0 0.0
        %951 = vmatprep.subr.mxu0 0.0
        %952 = vmatpush1.msra.mxu0 0.0
        %953 = vmatprep.subr.mxu0 0.0
        %954 = vmatpush1.msra.mxu0 0.0
        %955 = vmatprep.subr.mxu0 0.0
        %956 = vmatpush1.msra.mxu0 0.0
        %957 = vmatprep.subr.mxu0 0.0
        %958 = vmatpush1.msra.mxu0 %v825
        %959 = vmatprep.subr.mxu0 0.0
        %960 = vmatpush2.msra.mxu0 0.0
        %961 = vmatprep.subr.mxu0 0.0
        %962 = vmatpush2.msra.mxu0 0.0
        %963 = vmatprep.subr.mxu0 0.0
        %964 = vmatpush2.msra.mxu0 0.0
        %965 = vmatprep.subr.mxu0 0.0
        %966 = vmatpush2.msra.mxu0 0.0
        %967 = vmatprep.subr.mxu0 0.0
        %968 = vmatpush2.msra.mxu0 0.0
        %969 = vmatprep.subr.mxu0 0.0
        %970 = vmatpush2.msra.mxu0 0.0
        %971 = vmatprep.subr.mxu0 0.0
        %972 = vmatpush2.msra.mxu0 0.0
        %973 = vmatprep.subr.mxu0 0.0
        %974 = vmatpush2.msra.mxu0 0.0
        %975 = vmatprep.subr.mxu0 0.0
        %976 = vmatpush2.msra.mxu0 0.0
        %977 = vmatprep.subr.mxu0 0.0
        %978 = vmatpush2.msra.mxu0 0.0
        %979 = vmatprep.subr.mxu0 0.0
        %980 = vmatpush2.msra.mxu0 0.0
        %981 = vmatprep.subr.mxu0 0.0
        %982 = vmatpush2.msra.mxu0 0.0
        %983 = vmatprep.subr.mxu0 0.0
        %984 = vmatpush2.msra.mxu0 0.0
        %985 = vmatprep.subr.mxu0 0.0
        %986 = vmatpush2.msra.mxu0 0.0
        %987 = vmatprep.subr.mxu0 0.0
        %988 = vmatpush2.msra.mxu0 0.0
        %989 = vmatprep.subr.mxu0 0.0
        %990 = vmatpush2.msra.mxu0 0.0
        %991 = vmatprep.mubr.f32.mxu0 0.0
        %992 = vmatmul.mubr.f32.gmra.mxu0 %v925
        %v993 = vpop.f32.mrf.mxu0
        %v994 = vadd.f32 0.0, %v993
        %v995 = vpop.f32.mrf.mxu0
        %996 = vdwg.mxu0
        %997 = vrot.lane.b32.xlu0 %v828, 120
        %v998 = vpop.permute.xlu0 %997
        %999 = vrot.lane.b32.xlu0 %v741, 120
        %v1000 = vpop.permute.xlu0 %999
        %v1001 = vsel %vm836, %v998, 0
        %v1003 = vsel %vm836, %v1000, 0
        %1005 = vmatprep.subr.mxu0 0.0
        %1006 = vmatpush1.xpose.msra.mxu0 0.0
        %1007 = vmatprep.subr.mxu0 0.0
        %1008 = vmatpush1.xpose.msra.mxu0 0.0
        %1009 = vmatprep.subr.mxu0 0.0
        %1010 = vmatpush1.xpose.msra.mxu0 0.0
        %1011 = vmatprep.subr.mxu0 0.0
        %1012 = vmatpush1.xpose.msra.mxu0 0.0
        %1013 = vmatprep.subr.mxu0 0.0
        %1014 = vmatpush1.xpose.msra.mxu0 0.0
        %1015 = vmatprep.subr.mxu0 0.0
        %1016 = vmatpush1.xpose.msra.mxu0 0.0
        %1017 = vmatprep.subr.mxu0 0.0
        %1018 = vmatpush1.xpose.msra.mxu0 0.0
        %1019 = vmatprep.subr.mxu0 0.0
        %1020 = vmatpush1.xpose.msra.mxu0 0.0
        %1021 = vmatprep.subr.mxu0 0.0
        %1022 = vmatpush1.xpose.msra.mxu0 0.0
        %1023 = vmatprep.subr.mxu0 0.0
        %1024 = vmatpush1.xpose.msra.mxu0 0.0
        %1025 = vmatprep.subr.mxu0 0.0
        %1026 = vmatpush1.xpose.msra.mxu0 0.0
        %1027 = vmatprep.subr.mxu0 0.0
        %1028 = vmatpush1.xpose.msra.mxu0 0.0
        %1029 = vmatprep.subr.mxu0 0.0
        %1030 = vmatpush1.xpose.msra.mxu0 0.0
        %1031 = vmatprep.subr.mxu0 0.0
        %1032 = vmatpush1.xpose.msra.mxu0 0.0
        %1033 = vmatprep.subr.mxu0 0.0
        %1034 = vmatpush1.xpose.msra.mxu0 0.0
        %1035 = vmatprep.subr.mxu0 0.0
        %1036 = vmatpush1.xpose.msra.mxu0 %v1003
        %1037 = vmatprep.subr.mxu0 0.0
        %1038 = vmatpush2.xpose.msra.mxu0 0.0
        %1039 = vmatprep.subr.mxu0 0.0
        %1040 = vmatpush2.xpose.msra.mxu0 0.0
        %1041 = vmatprep.subr.mxu0 0.0
        %1042 = vmatpush2.xpose.msra.mxu0 0.0
        %1043 = vmatprep.subr.mxu0 0.0
        %1044 = vmatpush2.xpose.msra.mxu0 0.0
        %1045 = vmatprep.subr.mxu0 0.0
        %1046 = vmatpush2.xpose.msra.mxu0 0.0
        %1047 = vmatprep.subr.mxu0 0.0
        %1048 = vmatpush2.xpose.msra.mxu0 0.0
        %1049 = vmatprep.subr.mxu0 0.0
        %1050 = vmatpush2.xpose.msra.mxu0 0.0
        %1051 = vmatprep.subr.mxu0 0.0
        %1052 = vmatpush2.xpose.msra.mxu0 0.0
        %1053 = vmatprep.subr.mxu0 0.0
        %1054 = vmatpush2.xpose.msra.mxu0 0.0
        %1055 = vmatprep.subr.mxu0 0.0
        %1056 = vmatpush2.xpose.msra.mxu0 0.0
        %1057 = vmatprep.subr.mxu0 0.0
        %1058 = vmatpush2.xpose.msra.mxu0 0.0
        %1059 = vmatprep.subr.mxu0 0.0
        %1060 = vmatpush2.xpose.msra.mxu0 0.0
        %1061 = vmatprep.subr.mxu0 0.0
        %1062 = vmatpush2.xpose.msra.mxu0 0.0
        %1063 = vmatprep.subr.mxu0 0.0
        %1064 = vmatpush2.xpose.msra.mxu0 0.0
        %1065 = vmatprep.subr.mxu0 0.0
        %1066 = vmatpush2.xpose.msra.mxu0 0.0
        %1067 = vmatprep.subr.mxu0 0.0
        %1068 = vmatpush2.xpose.msra.mxu0 0.0
        %1069 = vmatprep.mubr.f32.mxu0 0.0
        %1070 = vmatmul.mubr.f32.gmra.mxu0 %v1001
        %v1071 = vpop.f32.mrf.mxu0
        %v1072 = vadd.f32 %v834, %v1071
        %v1073 = vpop.f32.mrf.mxu0
        %1074 = vdwg.mxu0
        %v1075 = vsel %vm836, %v1072, -inf
        %1076 = vmax.xlane.f32.xlu0 %v1075
        %v1077 = vpop.xlane.xlu0 %1076
        %v1078 = vsub.f32 %v1072, %v1077
        %v1079 = vmul.f32 %v1078, 1.442695
        %v1080 = vpow.pop %v1079
        %v1081 = vsel %vm836, %v1080, 0.0
        %1082 = vadd.xlane.f32.xlu0 %v1081
        %v1083 = vpop.xlane.xlu0 %1082
        %v1084 = vrcp.pop %v1083
        %v1085 = vmul.f32 %v1080, %v1084
        %1087 = vrot.lane.b32.xlu0 %v825, 120
        %v1088 = vpop.permute.xlu0 %1087
        %v1091 = vsel %vm836, %v1085, 0
        %1093 = vmatprep.subr.mxu0 0.0
        %1094 = vmatpush1.msra.mxu0 0.0
        %1095 = vmatprep.subr.mxu0 0.0
        %1096 = vmatpush1.msra.mxu0 0.0
        %1097 = vmatprep.subr.mxu0 0.0
        %1098 = vmatpush1.msra.mxu0 0.0
        %1099 = vmatprep.subr.mxu0 0.0
        %1100 = vmatpush1.msra.mxu0 0.0
        %1101 = vmatprep.subr.mxu0 0.0
        %1102 = vmatpush1.msra.mxu0 0.0
        %1103 = vmatprep.subr.mxu0 0.0
        %1104 = vmatpush1.msra.mxu0 0.0
        %1105 = vmatprep.subr.mxu0 0.0
        %1106 = vmatpush1.msra.mxu0 0.0
        %1107 = vmatprep.subr.mxu0 0.0
        %1108 = vmatpush1.msra.mxu0 0.0
        %1109 = vmatprep.subr.mxu0 0.0
        %1110 = vmatpush1.msra.mxu0 0.0
        %1111 = vmatprep.subr.mxu0 0.0
        %1112 = vmatpush1.msra.mxu0 0.0
        %1113 = vmatprep.subr.mxu0 0.0
        %1114 = vmatpush1.msra.mxu0 0.0
        %1115 = vmatprep.subr.mxu0 0.0
        %1116 = vmatpush1.msra.mxu0 0.0
        %1117 = vmatprep.subr.mxu0 0.0
        %1118 = vmatpush1.msra.mxu0 0.0
        %1119 = vmatprep.subr.mxu0 0.0
        %1120 = vmatpush1.msra.mxu0 0.0
        %1121 = vmatprep.subr.mxu0 0.0
        %1122 = vmatpush1.msra.mxu0 0.0
        %1123 = vmatprep.subr.mxu0 0.0
        %1124 = vmatpush1.msra.mxu0 %v1088
        %1125 = vmatprep.subr.mxu0 0.0
        %1126 = vmatpush2.msra.mxu0 0.0
        %1127 = vmatprep.subr.mxu0 0.0
        %1128 = vmatpush2.msra.mxu0 0.0
        %1129 = vmatprep.subr.mxu0 0.0
        %1130 = vmatpush2.msra.mxu0 0.0
        %1131 = vmatprep.subr.mxu0 0.0
        %1132 = vmatpush2.msra.mxu0 0.0
        %1133 = vmatprep.subr.mxu0 0.0
        %1134 = vmatpush2.msra.mxu0 0.0
        %1135 = vmatprep.subr.mxu0 0.0
        %1136 = vmatpush2.msra.mxu0 0.0
        %1137 = vmatprep.subr.mxu0 0.0
        %1138 = vmatpush2.msra.mxu0 0.0
        %1139 = vmatprep.subr.mxu0 0.0
        %1140 = vmatpush2.msra.mxu0 0.0
        %1141 = vmatprep.subr.mxu0 0.0
        %1142 = vmatpush2.msra.mxu0 0.0
        %1143 = vmatprep.subr.mxu0 0.0
        %1144 = vmatpush2.msra.mxu0 0.0
        %1145 = vmatprep.subr.mxu0 0.0
        %1146 = vmatpush2.msra.mxu0 0.0
        %1147 = vmatprep.subr.mxu0 0.0
        %1148 = vmatpush2.msra.mxu0 0.0
        %1149 = vmatprep.subr.mxu0 0.0
        %1150 = vmatpush2.msra.mxu0 0.0
        %1151 = vmatprep.subr.mxu0 0.0
        %1152 = vmatpush2.msra.mxu0 0.0
        %1153 = vmatprep.subr.mxu0 0.0
        %1154 = vmatpush2.msra.mxu0 0.0
        %1155 = vmatprep.subr.mxu0 0.0
        %1156 = vmatpush2.msra.mxu0 0.0
        %1157 = vmatprep.mubr.f32.mxu0 0.0
        %1158 = vmatmul.mubr.f32.gmra.mxu0 %v1091
        %v1159 = vpop.f32.mrf.mxu0
        %v1160 = vadd.f32 0.0, %v1159
        %v1161 = vpop.f32.mrf.mxu0
        %1162 = vdwg.mxu0
        %1163 = vrot.lane.b32.xlu0 %v828, 112
        %v1164 = vpop.permute.xlu0 %1163
        %1165 = vrot.lane.b32.xlu0 %v741, 112
        %v1166 = vpop.permute.xlu0 %1165
        %v1167 = vsel %vm836, %v1164, 0
        %v1169 = vsel %vm836, %v1166, 0
        %1171 = vmatprep.subr.mxu0 0.0
        %1172 = vmatpush1.xpose.msra.mxu0 0.0
        %1173 = vmatprep.subr.mxu0 0.0
        %1174 = vmatpush1.xpose.msra.mxu0 0.0
        %1175 = vmatprep.subr.mxu0 0.0
        %1176 = vmatpush1.xpose.msra.mxu0 0.0
        %1177 = vmatprep.subr.mxu0 0.0
        %1178 = vmatpush1.xpose.msra.mxu0 0.0
        %1179 = vmatprep.subr.mxu0 0.0
        %1180 = vmatpush1.xpose.msra.mxu0 0.0
        %1181 = vmatprep.subr.mxu0 0.0
        %1182 = vmatpush1.xpose.msra.mxu0 0.0
        %1183 = vmatprep.subr.mxu0 0.0
        %1184 = vmatpush1.xpose.msra.mxu0 0.0
        %1185 = vmatprep.subr.mxu0 0.0
        %1186 = vmatpush1.xpose.msra.mxu0 0.0
        %1187 = vmatprep.subr.mxu0 0.0
        %1188 = vmatpush1.xpose.msra.mxu0 0.0
        %1189 = vmatprep.subr.mxu0 0.0
        %1190 = vmatpush1.xpose.msra.mxu0 0.0
        %1191 = vmatprep.subr.mxu0 0.0
        %1192 = vmatpush1.xpose.msra.mxu0 0.0
        %1193 = vmatprep.subr.mxu0 0.0
        %1194 = vmatpush1.xpose.msra.mxu0 0.0
        %1195 = vmatprep.subr.mxu0 0.0
        %1196 = vmatpush1.xpose.msra.mxu0 0.0
        %1197 = vmatprep.subr.mxu0 0.0
        %1198 = vmatpush1.xpose.msra.mxu0 0.0
        %1199 = vmatprep.subr.mxu0 0.0
        %1200 = vmatpush1.xpose.msra.mxu0 0.0
        %1201 = vmatprep.subr.mxu0 0.0
        %1202 = vmatpush1.xpose.msra.mxu0 %v1169
        %1203 = vmatprep.subr.mxu0 0.0
        %1204 = vmatpush2.xpose.msra.mxu0 0.0
        %1205 = vmatprep.subr.mxu0 0.0
        %1206 = vmatpush2.xpose.msra.mxu0 0.0
        %1207 = vmatprep.subr.mxu0 0.0
        %1208 = vmatpush2.xpose.msra.mxu0 0.0
        %1209 = vmatprep.subr.mxu0 0.0
        %1210 = vmatpush2.xpose.msra.mxu0 0.0
        %1211 = vmatprep.subr.mxu0 0.0
        %1212 = vmatpush2.xpose.msra.mxu0 0.0
        %1213 = vmatprep.subr.mxu0 0.0
        %1214 = vmatpush2.xpose.msra.mxu0 0.0
        %1215 = vmatprep.subr.mxu0 0.0
        %1216 = vmatpush2.xpose.msra.mxu0 0.0
        %1217 = vmatprep.subr.mxu0 0.0
        %1218 = vmatpush2.xpose.msra.mxu0 0.0
        %1219 = vmatprep.subr.mxu0 0.0
        %1220 = vmatpush2.xpose.msra.mxu0 0.0
        %1221 = vmatprep.subr.mxu0 0.0
        %1222 = vmatpush2.xpose.msra.mxu0 0.0
        %1223 = vmatprep.subr.mxu0 0.0
        %1224 = vmatpush2.xpose.msra.mxu0 0.0
        %1225 = vmatprep.subr.mxu0 0.0
        %1226 = vmatpush2.xpose.msra.mxu0 0.0
        %1227 = vmatprep.subr.mxu0 0.0
        %1228 = vmatpush2.xpose.msra.mxu0 0.0
        %1229 = vmatprep.subr.mxu0 0.0
        %1230 = vmatpush2.xpose.msra.mxu0 0.0
        %1231 = vmatprep.subr.mxu0 0.0
        %1232 = vmatpush2.xpose.msra.mxu0 0.0
        %1233 = vmatprep.subr.mxu0 0.0
        %1234 = vmatpush2.xpose.msra.mxu0 0.0
        %1235 = vmatprep.mubr.f32.mxu0 0.0
        %1236 = vmatmul.mubr.f32.gmra.mxu0 %v1167
        %v1237 = vpop.f32.mrf.mxu0
        %v1238 = vadd.f32 %v834, %v1237
        %v1239 = vpop.f32.mrf.mxu0
        %1240 = vdwg.mxu0
        %v1241 = vsel %vm836, %v1238, -inf
        %1242 = vmax.xlane.f32.xlu0 %v1241
        %v1243 = vpop.xlane.xlu0 %1242
        %v1244 = vsub.f32 %v1238, %v1243
        %v1245 = vmul.f32 %v1244, 1.442695
        %v1246 = vpow.pop %v1245
        %v1247 = vsel %vm836, %v1246, 0.0
        %1248 = vadd.xlane.f32.xlu0 %v1247
        %v1249 = vpop.xlane.xlu0 %1248
        %v1250 = vrcp.pop %v1249
        %v1251 = vmul.f32 %v1246, %v1250
        %1252 = vrot.lane.b32.xlu0 %v825, 112
        %v1253 = vpop.permute.xlu0 %1252
        %v1256 = vsel %vm836, %v1251, 0
        %1258 = vmatprep.subr.mxu0 0.0
        %1259 = vmatpush1.msra.mxu0 0.0
        %1260 = vmatprep.subr.mxu0 0.0
        %1261 = vmatpush1.msra.mxu0 0.0
        %1262 = vmatprep.subr.mxu0 0.0
        %1263 = vmatpush1.msra.mxu0 0.0
        %1264 = vmatprep.subr.mxu0 0.0
        %1265 = vmatpush1.msra.mxu0 0.0
        %1266 = vmatprep.subr.mxu0 0.0
        %1267 = vmatpush1.msra.mxu0 0.0
        %1268 = vmatprep.subr.mxu0 0.0
        %1269 = vmatpush1.msra.mxu0 0.0
        %1270 = vmatprep.subr.mxu0 0.0
        %1271 = vmatpush1.msra.mxu0 0.0
        %1272 = vmatprep.subr.mxu0 0.0
        %1273 = vmatpush1.msra.mxu0 0.0
        %1274 = vmatprep.subr.mxu0 0.0
        %1275 = vmatpush1.msra.mxu0 0.0
        %1276 = vmatprep.subr.mxu0 0.0
        %1277 = vmatpush1.msra.mxu0 0.0
        %1278 = vmatprep.subr.mxu0 0.0
        %1279 = vmatpush1.msra.mxu0 0.0
        %1280 = vmatprep.subr.mxu0 0.0
        %1281 = vmatpush1.msra.mxu0 0.0
        %1282 = vmatprep.subr.mxu0 0.0
        %1283 = vmatpush1.msra.mxu0 0.0
        %1284 = vmatprep.subr.mxu0 0.0
        %1285 = vmatpush1.msra.mxu0 0.0
        %1286 = vmatprep.subr.mxu0 0.0
        %1287 = vmatpush1.msra.mxu0 0.0
        %1288 = vmatprep.subr.mxu0 0.0
        %1289 = vmatpush1.msra.mxu0 %v1253
        %1290 = vmatprep.subr.mxu0 0.0
        %1291 = vmatpush2.msra.mxu0 0.0
        %1292 = vmatprep.subr.mxu0 0.0
        %1293 = vmatpush2.msra.mxu0 0.0
        %1294 = vmatprep.subr.mxu0 0.0
        %1295 = vmatpush2.msra.mxu0 0.0
        %1296 = vmatprep.subr.mxu0 0.0
        %1297 = vmatpush2.msra.mxu0 0.0
        %1298 = vmatprep.subr.mxu0 0.0
        %1299 = vmatpush2.msra.mxu0 0.0
        %1300 = vmatprep.subr.mxu0 0.0
        %1301 = vmatpush2.msra.mxu0 0.0
        %1302 = vmatprep.subr.mxu0 0.0
        %1303 = vmatpush2.msra.mxu0 0.0
        %1304 = vmatprep.subr.mxu0 0.0
        %1305 = vmatpush2.msra.mxu0 0.0
        %1306 = vmatprep.subr.mxu0 0.0
        %1307 = vmatpush2.msra.mxu0 0.0
        %1308 = vmatprep.subr.mxu0 0.0
        %1309 = vmatpush2.msra.mxu0 0.0
        %1310 = vmatprep.subr.mxu0 0.0
        %1311 = vmatpush2.msra.mxu0 0.0
        %1312 = vmatprep.subr.mxu0 0.0
        %1313 = vmatpush2.msra.mxu0 0.0
        %1314 = vmatprep.subr.mxu0 0.0
        %1315 = vmatpush2.msra.mxu0 0.0
        %1316 = vmatprep.subr.mxu0 0.0
        %1317 = vmatpush2.msra.mxu0 0.0
        %1318 = vmatprep.subr.mxu0 0.0
        %1319 = vmatpush2.msra.mxu0 0.0
        %1320 = vmatprep.subr.mxu0 0.0
        %1321 = vmatpush2.msra.mxu0 0.0
        %1322 = vmatprep.mubr.f32.mxu0 0.0
        %1323 = vmatmul.mubr.f32.gmra.mxu0 %v1256
        %v1324 = vpop.f32.mrf.mxu0
        %v1325 = vadd.f32 0.0, %v1324
        %v1326 = vpop.f32.mrf.mxu0
        %1327 = vdwg.mxu0
        %1328 = vrot.lane.b32.xlu0 %v828, 104
        %v1329 = vpop.permute.xlu0 %1328
        %1330 = vrot.lane.b32.xlu0 %v741, 104
        %v1331 = vpop.permute.xlu0 %1330
        %v1332 = vsel %vm836, %v1329, 0
        %v1334 = vsel %vm836, %v1331, 0
        %1336 = vmatprep.subr.mxu0 0.0
        %1337 = vmatpush1.xpose.msra.mxu0 0.0
        %1338 = vmatprep.subr.mxu0 0.0
        %1339 = vmatpush1.xpose.msra.mxu0 0.0
        %1340 = vmatprep.subr.mxu0 0.0
        %1341 = vmatpush1.xpose.msra.mxu0 0.0
        %1342 = vmatprep.subr.mxu0 0.0
        %1343 = vmatpush1.xpose.msra.mxu0 0.0
        %1344 = vmatprep.subr.mxu0 0.0
        %1345 = vmatpush1.xpose.msra.mxu0 0.0
        %1346 = vmatprep.subr.mxu0 0.0
        %1347 = vmatpush1.xpose.msra.mxu0 0.0
        %1348 = vmatprep.subr.mxu0 0.0
        %1349 = vmatpush1.xpose.msra.mxu0 0.0
        %1350 = vmatprep.subr.mxu0 0.0
        %1351 = vmatpush1.xpose.msra.mxu0 0.0
        %1352 = vmatprep.subr.mxu0 0.0
        %1353 = vmatpush1.xpose.msra.mxu0 0.0
        %1354 = vmatprep.subr.mxu0 0.0
        %1355 = vmatpush1.xpose.msra.mxu0 0.0
        %1356 = vmatprep.subr.mxu0 0.0
        %1357 = vmatpush1.xpose.msra.mxu0 0.0
        %1358 = vmatprep.subr.mxu0 0.0
        %1359 = vmatpush1.xpose.msra.mxu0 0.0
        %1360 = vmatprep.subr.mxu0 0.0
        %1361 = vmatpush1.xpose.msra.mxu0 0.0
        %1362 = vmatprep.subr.mxu0 0.0
        %1363 = vmatpush1.xpose.msra.mxu0 0.0
        %1364 = vmatprep.subr.mxu0 0.0
        %1365 = vmatpush1.xpose.msra.mxu0 0.0
        %1366 = vmatprep.subr.mxu0 0.0
        %1367 = vmatpush1.xpose.msra.mxu0 %v1334
        %1368 = vmatprep.subr.mxu0 0.0
        %1369 = vmatpush2.xpose.msra.mxu0 0.0
        %1370 = vmatprep.subr.mxu0 0.0
        %1371 = vmatpush2.xpose.msra.mxu0 0.0
        %1372 = vmatprep.subr.mxu0 0.0
        %1373 = vmatpush2.xpose.msra.mxu0 0.0
        %1374 = vmatprep.subr.mxu0 0.0
        %1375 = vmatpush2.xpose.msra.mxu0 0.0
        %1376 = vmatprep.subr.mxu0 0.0
        %1377 = vmatpush2.xpose.msra.mxu0 0.0
        %1378 = vmatprep.subr.mxu0 0.0
        %1379 = vmatpush2.xpose.msra.mxu0 0.0
        %1380 = vmatprep.subr.mxu0 0.0
        %1381 = vmatpush2.xpose.msra.mxu0 0.0
        %1382 = vmatprep.subr.mxu0 0.0
        %1383 = vmatpush2.xpose.msra.mxu0 0.0
        %1384 = vmatprep.subr.mxu0 0.0
        %1385 = vmatpush2.xpose.msra.mxu0 0.0
        %1386 = vmatprep.subr.mxu0 0.0
        %1387 = vmatpush2.xpose.msra.mxu0 0.0
        %1388 = vmatprep.subr.mxu0 0.0
        %1389 = vmatpush2.xpose.msra.mxu0 0.0
        %1390 = vmatprep.subr.mxu0 0.0
        %1391 = vmatpush2.xpose.msra.mxu0 0.0
        %1392 = vmatprep.subr.mxu0 0.0
        %1393 = vmatpush2.xpose.msra.mxu0 0.0
        %1394 = vmatprep.subr.mxu0 0.0
        %1395 = vmatpush2.xpose.msra.mxu0 0.0
        %1396 = vmatprep.subr.mxu0 0.0
        %1397 = vmatpush2.xpose.msra.mxu0 0.0
        %1398 = vmatprep.subr.mxu0 0.0
        %1399 = vmatpush2.xpose.msra.mxu0 0.0
        %1400 = vmatprep.mubr.f32.mxu0 0.0
        %1401 = vmatmul.mubr.f32.gmra.mxu0 %v1332
        %v1402 = vpop.f32.mrf.mxu0
        %v1403 = vadd.f32 %v834, %v1402
        %v1404 = vpop.f32.mrf.mxu0
        %1405 = vdwg.mxu0
        %v1406 = vsel %vm836, %v1403, -inf
        %1407 = vmax.xlane.f32.xlu0 %v1406
        %v1408 = vpop.xlane.xlu0 %1407
        %v1409 = vsub.f32 %v1403, %v1408
        %v1410 = vmul.f32 %v1409, 1.442695
        %v1411 = vpow.pop %v1410
        %v1412 = vsel %vm836, %v1411, 0.0
        %1413 = vadd.xlane.f32.xlu0 %v1412
        %v1414 = vpop.xlane.xlu0 %1413
        %v1415 = vrcp.pop %v1414
        %v1416 = vmul.f32 %v1411, %v1415
        %1417 = vrot.lane.b32.xlu0 %v825, 104
        %v1418 = vpop.permute.xlu0 %1417
        %v1421 = vsel %vm836, %v1416, 0
        %1423 = vmatprep.subr.mxu0 0.0
        %1424 = vmatpush1.msra.mxu0 0.0
        %1425 = vmatprep.subr.mxu0 0.0
        %1426 = vmatpush1.msra.mxu0 0.0
        %1427 = vmatprep.subr.mxu0 0.0
        %1428 = vmatpush1.msra.mxu0 0.0
        %1429 = vmatprep.subr.mxu0 0.0
        %1430 = vmatpush1.msra.mxu0 0.0
        %1431 = vmatprep.subr.mxu0 0.0
        %1432 = vmatpush1.msra.mxu0 0.0
        %1433 = vmatprep.subr.mxu0 0.0
        %1434 = vmatpush1.msra.mxu0 0.0
        %1435 = vmatprep.subr.mxu0 0.0
        %1436 = vmatpush1.msra.mxu0 0.0
        %1437 = vmatprep.subr.mxu0 0.0
        %1438 = vmatpush1.msra.mxu0 0.0
        %1439 = vmatprep.subr.mxu0 0.0
        %1440 = vmatpush1.msra.mxu0 0.0
        %1441 = vmatprep.subr.mxu0 0.0
        %1442 = vmatpush1.msra.mxu0 0.0
        %1443 = vmatprep.subr.mxu0 0.0
        %1444 = vmatpush1.msra.mxu0 0.0
        %1445 = vmatprep.subr.mxu0 0.0
        %1446 = vmatpush1.msra.mxu0 0.0
        %1447 = vmatprep.subr.mxu0 0.0
        %1448 = vmatpush1.msra.mxu0 0.0
        %1449 = vmatprep.subr.mxu0 0.0
        %1450 = vmatpush1.msra.mxu0 0.0
        %1451 = vmatprep.subr.mxu0 0.0
        %1452 = vmatpush1.msra.mxu0 0.0
        %1453 = vmatprep.subr.mxu0 0.0
        %1454 = vmatpush1.msra.mxu0 %v1418
        %1455 = vmatprep.subr.mxu0 0.0
        %1456 = vmatpush2.msra.mxu0 0.0
        %1457 = vmatprep.subr.mxu0 0.0
        %1458 = vmatpush2.msra.mxu0 0.0
        %1459 = vmatprep.subr.mxu0 0.0
        %1460 = vmatpush2.msra.mxu0 0.0
        %1461 = vmatprep.subr.mxu0 0.0
        %1462 = vmatpush2.msra.mxu0 0.0
        %1463 = vmatprep.subr.mxu0 0.0
        %1464 = vmatpush2.msra.mxu0 0.0
        %1465 = vmatprep.subr.mxu0 0.0
        %1466 = vmatpush2.msra.mxu0 0.0
        %1467 = vmatprep.subr.mxu0 0.0
        %1468 = vmatpush2.msra.mxu0 0.0
        %1469 = vmatprep.subr.mxu0 0.0
        %1470 = vmatpush2.msra.mxu0 0.0
        %1471 = vmatprep.subr.mxu0 0.0
        %1472 = vmatpush2.msra.mxu0 0.0
        %1473 = vmatprep.subr.mxu0 0.0
        %1474 = vmatpush2.msra.mxu0 0.0
        %1475 = vmatprep.subr.mxu0 0.0
        %1476 = vmatpush2.msra.mxu0 0.0
        %1477 = vmatprep.subr.mxu0 0.0
        %1478 = vmatpush2.msra.mxu0 0.0
        %1479 = vmatprep.subr.mxu0 0.0
        %1480 = vmatpush2.msra.mxu0 0.0
        %1481 = vmatprep.subr.mxu0 0.0
        %1482 = vmatpush2.msra.mxu0 0.0
        %1483 = vmatprep.subr.mxu0 0.0
        %1484 = vmatpush2.msra.mxu0 0.0
        %1485 = vmatprep.subr.mxu0 0.0
        %1486 = vmatpush2.msra.mxu0 0.0
        %1487 = vmatprep.mubr.f32.mxu0 0.0
        %1488 = vmatmul.mubr.f32.gmra.mxu0 %v1421
        %v1489 = vpop.f32.mrf.mxu0
        %v1490 = vadd.f32 0.0, %v1489
        %v1491 = vpop.f32.mrf.mxu0
        %1492 = vdwg.mxu0
        %1494 = vrot.lane.b32.xlu0 %v1160, 8
        %v1495 = vpop.permute.xlu0 %1494
        %1498 = vrot.lane.b32.xlu0 %v1325, 16
        %v1499 = vpop.permute.xlu0 %1498
        %1502 = vrot.lane.b32.xlu0 %v1490, 24
        %v1503 = vpop.permute.xlu0 %1502
        %v1505 = vsel %vm836, %v994, %v1495
        %vm1506 = vcmask 130048
        %v1507 = vsel %vm1506, %v1505, %v1499
        %vm1508 = vcmask 195584
        %v1509 = vsel %vm1508, %v1507, %v1503
        %v1510 = vld [vmem:[#allocation13] sm:$0xff]
        %v1511 = vld [vmem:[#allocation13 + $0x8] sm:$0xff]
        %v1512 = vld [vmem:[#allocation13 + $0x10] sm:$0xff]
        %v1513 = vld [vmem:[#allocation13 + $0x18] sm:$0xff]
        %v1514 = vld [vmem:[%s11] sm:$0x1]
        %v1516 = vlaneseq
        %v1517 = vshrl.u32 %v1516, 7
        %v1518 = vsub.s32 0, %v1517
        %v1519 = vrot.slane %v1514, %v1518
        %v1522 = vsel %vm586, %v1509, 0
        %1524 = vmatprep.subr.mxu0 0.0
        %1525 = vmatpush1.msra.mxu0 0.0
        %1526 = vmatprep.subr.mxu0 0.0
        %1527 = vmatpush1.msra.mxu0 0.0
        %1528 = vmatprep.subr.mxu0 0.0
        %1529 = vmatpush1.msra.mxu0 0.0
        %1530 = vmatprep.subr.mxu0 0.0
        %1531 = vmatpush1.msra.mxu0 0.0
        %1532 = vmatprep.subr.mxu0 0.0
        %1533 = vmatpush1.msra.mxu0 0.0
        %1534 = vmatprep.subr.mxu0 0.0
        %1535 = vmatpush1.msra.mxu0 0.0
        %1536 = vmatprep.subr.mxu0 0.0
        %1537 = vmatpush1.msra.mxu0 0.0
        %1538 = vmatprep.subr.mxu0 0.0
        %1539 = vmatpush1.msra.mxu0 0.0
        %1540 = vmatprep.subr.mxu0 0.0
        %1541 = vmatpush1.msra.mxu0 0.0
        %1542 = vmatprep.subr.mxu0 0.0
        %1543 = vmatpush1.msra.mxu0 0.0
        %1544 = vmatprep.subr.mxu0 0.0
        %1545 = vmatpush1.msra.mxu0 0.0
        %1546 = vmatprep.subr.mxu0 0.0
        %1547 = vmatpush1.msra.mxu0 0.0
        %1548 = vmatprep.subr.mxu0 0.0
        %1549 = vmatpush1.msra.mxu0 %v1513
        %1550 = vmatprep.subr.mxu0 0.0
        %1551 = vmatpush1.msra.mxu0 %v1512
        %1552 = vmatprep.subr.mxu0 0.0
        %1553 = vmatpush1.msra.mxu0 %v1511
        %1554 = vmatprep.subr.mxu0 0.0
        %1555 = vmatpush1.msra.mxu0 %v1510
        %1556 = vmatprep.subr.mxu0 0.0
        %1557 = vmatpush2.msra.mxu0 0.0
        %1558 = vmatprep.subr.mxu0 0.0
        %1559 = vmatpush2.msra.mxu0 0.0
        %1560 = vmatprep.subr.mxu0 0.0
        %1561 = vmatpush2.msra.mxu0 0.0
        %1562 = vmatprep.subr.mxu0 0.0
        %1563 = vmatpush2.msra.mxu0 0.0
        %1564 = vmatprep.subr.mxu0 0.0
        %1565 = vmatpush2.msra.mxu0 0.0
        %1566 = vmatprep.subr.mxu0 0.0
        %1567 = vmatpush2.msra.mxu0 0.0
        %1568 = vmatprep.subr.mxu0 0.0
        %1569 = vmatpush2.msra.mxu0 0.0
        %1570 = vmatprep.subr.mxu0 0.0
        %1571 = vmatpush2.msra.mxu0 0.0
        %1572 = vmatprep.subr.mxu0 0.0
        %1573 = vmatpush2.msra.mxu0 0.0
        %1574 = vmatprep.subr.mxu0 0.0
        %1575 = vmatpush2.msra.mxu0 0.0
        %1576 = vmatprep.subr.mxu0 0.0
        %1577 = vmatpush2.msra.mxu0 0.0
        %1578 = vmatprep.subr.mxu0 0.0
        %1579 = vmatpush2.msra.mxu0 0.0
        %1580 = vmatprep.subr.mxu0 0.0
        %1581 = vmatpush2.msra.mxu0 0.0
        %1582 = vmatprep.subr.mxu0 0.0
        %1583 = vmatpush2.msra.mxu0 0.0
        %1584 = vmatprep.subr.mxu0 0.0
        %1585 = vmatpush2.msra.mxu0 0.0
        %1586 = vmatprep.subr.mxu0 0.0
        %1587 = vmatpush2.msra.mxu0 0.0
        %1588 = vmatprep.mubr.f32.mxu0 0.0
        %1589 = vmatmul.mubr.f32.gmra.mxu0 %v1522
        %v1590 = vpop.f32.mrf.mxu0
        %v1591 = vadd.f32 %v1519, %v1590
        %v1592 = vpop.f32.mrf.mxu0
        %1593 = vdwg.mxu0
        %1594 = vst.msk [vmem:[%s568] sm:$0xff] %vm586, %v1591
        %s1595 = sand.u32 %s314, 1
        %s1596 = scalar_lea.sflag [#allocation4], %s1595
        %s1597 = sand.u32 %s314, 1
        %s1598 = smul.addr %s1597, 8
        %s1599 = scalar_lea.vmem [#allocation14], %s1598
        // Predicated region
        $region97: #{tpu_custom_call.1} parent=67 // pred_check
          %p1600 = pneg %p324
        $region98: #{tpu_custom_call.1} parent=67 // pred_check_branch
          %1602 = sbr.rel (%p1600) target = $region100
        $region99: #{tpu_custom_call.1} parent=67 // pred_region
          %s1604 = ssub.s32 128, 128
          %1605 = vsyncadd %s1596, %s1604
          %s1606 = smul.addr %s34, 128
          %s1607 = scalar_lea.hbm %s12, %s1606
          %s1609 = sshll.u32 %s1599, 4
          %s1610 = int_to_ptr.vmem [resolvable:$true] %s1609
          %1612 = dma.vmem_to_hbm [thread:$0]  %s1610, 128, %s1607, %s1596
        $region100: #{tpu_custom_call.1} parent=67 // pred_fallthru
          _
      $region68: #{tpu_custom_call.1} parent=5 // pred_fallthru
        _
      %p1613 = scmp.le.s32.totalorder 2, %s29
      // Predicated region
      $region101: #{tpu_custom_call.1} parent=5 // pred_check
        %p1614 = pneg %p1613
      $region102: #{tpu_custom_call.1} parent=5 // pred_check_branch
        %1616 = sbr.rel (%p1614) target = $region104
      $region103: #{tpu_custom_call.1} parent=5 // pred_region
        %s1617 = ssub.s32 %s29, 2
        // Predicated region
        $region105: #{tpu_custom_call.1} parent=103 // pred_check
          %p1618 = pneg %p330
        $region106: #{tpu_custom_call.1} parent=103 // pred_check_branch
          %1620 = sbr.rel (%p1618) target = $region108
        $region107: #{tpu_custom_call.1} parent=103 // pred_region
          %s1621 = sand.u32 %s315, 1
          %s1622 = scalar_lea.sflag [#allocation4], %s1621
          %s1623 = sand.u32 %s315, 1
          %s1624 = smul.addr %s1623, 8
          %s1625 = scalar_lea.vmem [#allocation14], %s1624
          %1626 = dma.done %s1622, 128
        $region108: #{tpu_custom_call.1} parent=103 // pred_fallthru
          _
      $region104: #{tpu_custom_call.1} parent=5 // pred_fallthru
        _
    $region6: #{tpu_custom_call.1} parent=1 // loop_footer
      %s33 = sadd.s32 1, %s29
    $region7: #{tpu_custom_call.1} parent=1 // loop_footer_branch
      %28 = sbr.rel target = $region3
    $region8: #{tpu_custom_call.1} parent=1 // loop_exit
      _
    %1627 = vsyncpa [#allocation3], 1
    %s1628 = scalar_lea.sflag [#allocation3], 1
    %1629 = vsyncpa %s1628, 1
    %1630 = vsyncpa [#allocation6], 1
    %s1631 = scalar_lea.sflag [#allocation6], 1
    %1632 = vsyncpa %s1631, 1
    %1633 = vsyncpa [#allocation9], 1
    %1634 = vsyncpa [#allocation12], 1
    %1635 = vsyncpa [#allocation4], 1
    %s1636 = scalar_lea.sflag [#allocation4], 1
    %1637 = vsyncpa %s1636, 1

</llo_original>
